<compile_context>
chip_gen: v7x
topology: tpu7x:2x2x1
jax: 0.10.0
libtpu: 0.0.40
codegen_flags: <defaults>
</compile_context>

<pallas_src>
import jax
import jax.numpy as jnp
from jax.experimental import pallas as pl
from jax.experimental.pallas import tpu as pltpu


def _round_up(n, m):
    return ((n + m - 1) // m) * m


# ----------------------------- Pallas kernel --------------------------------
def _mlp_kernel(x_ref,
                w1_ref, b1_ref,
                w2_ref, b2_ref,
                w3_ref, b3_ref,
                w4_ref, b4_ref,
                w5_ref, b5_ref,
                o_ref):
    """One (head, batch_tile) grid step: full 5-layer MLP on one batch tile."""

    def dense(h, w_ref, b_ref, relu):
        # bf16 x bf16 on the MXU with f32 accumulation; bias/ReLU on the f32 accumulator.
        y = jnp.dot(h.astype(w_ref.dtype), w_ref[...],
                    preferred_element_type=jnp.float32)
        y = y + b_ref[...]                            # [1, out] broadcasts over batch rows
        if relu:
            y = jnp.maximum(y, 0.0)
        return y

    h = x_ref[...]                                    # [bt, n_states_pad] f32
    h = dense(h, w1_ref, b1_ref, True)                # -> [bt, 1024]
    h = dense(h, w2_ref, b2_ref, True)                # -> [bt, 512]
    h = dense(h, w3_ref, b3_ref, True)                # -> [bt, 128]  (64 zero-padded)
    h = dense(h, w4_ref, b4_ref, True)                # -> [bt, 128]  (32 zero-padded)
    o_ref[...] = dense(h, w5_ref, b5_ref, False)      # -> [bt, 128]  (n_actions zero-padded)


def _run_mlp(x, head_params, batch_tile):
    """x: [B_pad, n_in_pad] f32 with B_pad % batch_tile == 0.
    head_params: list of (W [H, in_pad, out_pad] bf16, b [H, 1, out_pad] f32).
    Returns [H, B_pad, out_pad] f32."""
    n_heads = int(head_params[0][0].shape[0])
    b_pad, n_in = x.shape
    n_out = int(head_params[-1][0].shape[-1])
    n_btiles = b_pad // batch_tile
    grid = (n_heads, n_btiles)

    in_specs = [pl.BlockSpec((batch_tile, n_in), lambda h, i: (i, 0))]
    flat_args = [x]
    for w, b in head_params:
        # Weight / bias blocks depend only on the head axis -> they stay VMEM-resident
        # (no re-DMA) while the batch axis iterates.
        in_specs.append(pl.BlockSpec((None,) + tuple(w.shape[1:]), lambda h, i: (h, 0, 0)))
        in_specs.append(pl.BlockSpec((None,) + tuple(b.shape[1:]), lambda h, i: (h, 0, 0)))
        flat_args += [w, b]

    out_spec = pl.BlockSpec((None, batch_tile, n_out), lambda h, i: (h, i, 0))

    flops = 2 * b_pad * n_heads * sum(
        int(w.shape[1]) * int(w.shape[2]) for w, _ in head_params)
    bytes_accessed = (
        x.size * x.dtype.itemsize
        + sum(int(w.size) * w.dtype.itemsize + int(b.size) * b.dtype.itemsize
              for w, b in head_params)
        + n_heads * b_pad * n_out * 4)

    return pl.pallas_call(
        _mlp_kernel,
        out_shape=jax.ShapeDtypeStruct((n_heads, b_pad, n_out), jnp.float32),
        grid=grid,
        in_specs=in_specs,
        out_specs=out_spec,
        compiler_params=pltpu.CompilerParams(
            dimension_semantics=("parallel", "parallel")),
        cost_estimate=pl.CostEstimate(
            flops=flops, transcendentals=0, bytes_accessed=bytes_accessed),
    )(*flat_args)


# ------------------------------ ZeldaNet model -------------------------------
class ZeldaNetPallas:
    """JAX/Pallas port of ZeldaNet (online + target MLP heads)."""

    HIDDEN = (1024, 512, 64, 32)
    LANE = 128
    SUBLANE = 8
    MAX_BATCH_TILE = 256

    def __init__(self, n_states, n_actions, key, weight_dtype=jnp.bfloat16):
        self.n_states = int(n_states)
        self.n_actions = int(n_actions)
        dims = (self.n_states,) + self.HIDDEN + (self.n_actions,)
        pdims = tuple(_round_up(d, self.LANE) for d in dims)
        self._n_in_pad = pdims[0]

        # nn.Linear-like init: U(-1/sqrt(fan_in), +1/sqrt(fan_in)) in f32.
        params = []
        for i in range(len(dims) - 1):
            fan_in, fan_out = dims[i], dims[i + 1]
            key, kw, kb = jax.random.split(key, 3)
            bound = 1.0 / float(fan_in) ** 0.5
            w = jax.random.uniform(kw, (fan_in, fan_out), jnp.float32, -bound, bound)
            b = jax.random.uniform(kb, (fan_out,), jnp.float32, -bound, bound)
            params.append((w, b))
        # target = deepcopy(online) at construction time.
        # TODO(synk): requires_grad=False on the target head is a training-time detail
        # with no forward-pass equivalent; forward semantics are unaffected.
        self.online_params = params
        self.target_params = [(w, b) for (w, b) in params]

        # Padded / stacked / bf16 kernel-side parameters (zero padding keeps padded
        # activation columns exactly 0 through every layer).
        def pad_head(p):
            out = []
            for i, (w, b) in enumerate(p):
                wp = jnp.zeros((pdims[i], pdims[i + 1]), jnp.float32)
                wp = wp.at[: w.shape[0], : w.shape[1]].set(w).astype(weight_dtype)
                bp = jnp.zeros((1, pdims[i + 1]), jnp.float32)
                bp = bp.at[0, : b.shape[0]].set(b)
                out.append((wp[None], bp[None]))          # leading head axis of 1
            return out

        online_k = pad_head(self.online_params)
        target_k = pad_head(self.target_params)
        both_k = [(jnp.concatenate([wo, wt], axis=0),
                   jnp.concatenate([bo, bt], axis=0))
                  for (wo, bo), (wt, bt) in zip(online_k, target_k)]
        self._kernel_params = {"online": online_k, "target": target_k, "both": both_k}

    # ---- wrapper glue (matches the PyTorch forward exactly) ----
    def _prep_input(self, x):
        if x.ndim == 2:
            x = x[None, ...]                  # unsqueeze(dim=0)
        x = x.reshape(x.shape[0], -1)         # flatten(start_dim=1, end_dim=-1)
        x = x.astype(jnp.float32)             # .float()
        B, F = x.shape
        assert F == self.n_states, f"expected {self.n_states} features, got {F}"
        tile = min(_round_up(max(B, 1), self.SUBLANE), self.MAX_BATCH_TILE)
        b_pad = _round_up(B, tile)
        x = jnp.pad(x, ((0, b_pad - B), (0, self._n_in_pad - F)))
        return x, B, tile

    def __call__(self, x, model):
        if model not in ("online", "target"):
            raise ValueError(f"unknown model {model!r}")
        xp, B, tile = self._prep_input(x)
        out = _run_mlp(xp, self._kernel_params[model], tile)
        return out[0, :B, : self.n_actions]

    def forward_both(self, x):
        """Fused online + target heads in a single pallas_call (one launch, both TCs on v7x)."""
        xp, B, tile = self._prep_input(x)
        out = _run_mlp(xp, self._kernel_params["both"], tile)
        return out[0, :B, : self.n_actions], out[1, :B, : self.n_actions]


# --------------------------------- main --------------------------------------
if __name__ == "__main__":
    key = jax.random.PRNGKey(0)
    k_param, k_in = jax.random.split(key)

    # Per-sample state is (8, 16) -> flattened n_states = 128; batch = 2.
    batch, h, w = 2, 8, 16
    n_states = h * w
    n_actions = 8

    net = ZeldaNetPallas(n_states, n_actions, k_param)
    x = jax.random.normal(k_in, (batch, h, w), dtype=jnp.float32)

    out_online = net(x, "online")
    out_target = net(x, "target")
    both_online, both_target = net.forward_both(x)
    jax.block_until_ready((out_online, out_target, both_online, both_target))

    # Pure-JAX references.
    def ref_f32(x, params):
        h_ = x.reshape(x.shape[0], -1).astype(jnp.float32)
        for i, (wgt, b) in enumerate(params):
            h_ = h_ @ wgt + b
            if i < len(params) - 1:
                h_ = jnp.maximum(h_, 0.0)
        return h_

    def ref_bf16(x, params):
        # Same bf16-weight / f32-accumulation recipe as the kernel.
        h_ = x.reshape(x.shape[0], -1).astype(jnp.float32)
        for i, (wgt, b) in enumerate(params):
            h_ = jnp.dot(h_.astype(jnp.bfloat16), wgt.astype(jnp.bfloat16),
                         preferred_element_type=jnp.float32) + b
            if i < len(params) - 1:
                h_ = jnp.maximum(h_, 0.0)
        return h_

    assert out_online.shape == (batch, n_actions)
    assert out_target.shape == (batch, n_actions)
    # Tight check vs. a reference that uses the same bf16-weight recipe.
    assert jnp.allclose(out_online, ref_bf16(x, net.online_params), atol=1e-4, rtol=1e-4)
    # Loose check vs. the full-f32 reference (bf16 weight quantization error only).
    assert jnp.allclose(out_online, ref_f32(x, net.online_params), atol=3e-2, rtol=3e-2)
    # target == deepcopy(online) at construction.
    assert jnp.allclose(out_online, out_target)
    # Fused-head call matches the per-head calls.
    assert jnp.allclose(both_online, out_online, atol=1e-5)
    assert jnp.allclose(both_target, out_target, atol=1e-5)

    # 2-D input path (unsqueeze -> batch of 1).
    x2d = jax.random.normal(k_in, (h, w), dtype=jnp.float32)
    out_2d = jax.block_until_ready(net(x2d, "online"))
    assert out_2d.shape == (1, n_actions)

    print("KERNEL_OK")
</pallas_src>

<mosaic_0001>
module attributes {stable_mosaic.version = 11 : i64} {
  func.func @_mlp_kernel(%arg0: i32, %arg1: i32, %arg2: memref<8x128xf32, #tpu.memory_space<vmem>>, %arg3: memref<1x128x1024xbf16, #tpu.memory_space<vmem>>, %arg4: memref<1x1x1024xf32, #tpu.memory_space<vmem>>, %arg5: memref<1x1024x512xbf16, #tpu.memory_space<vmem>>, %arg6: memref<1x1x512xf32, #tpu.memory_space<vmem>>, %arg7: memref<1x512x128xbf16, #tpu.memory_space<vmem>>, %arg8: memref<1x1x128xf32, #tpu.memory_space<vmem>>, %arg9: memref<1x128x128xbf16, #tpu.memory_space<vmem>>, %arg10: memref<1x1x128xf32, #tpu.memory_space<vmem>>, %arg11: memref<1x128x128xbf16, #tpu.memory_space<vmem>>, %arg12: memref<1x1x128xf32, #tpu.memory_space<vmem>>, %arg13: memref<1x8x128xf32, #tpu.memory_space<vmem>>) attributes {dimension_semantics = [#tpu.dimension_semantics<parallel>, #tpu.dimension_semantics<parallel>], iteration_bounds = array<i64: 1, 1>, scalar_prefetch = 0 : i64, scratch_operands = 0 : i64, tpu.core_type = #tpu.core_type<tc>, window_params = [{transform_indices = @transform_0, window_bounds = array<i64: 8, 128>}, {transform_indices = @transform_1, window_bounds = array<i64: 1, 128, 1024>}, {transform_indices = @transform_2, window_bounds = array<i64: 1, 1, 1024>}, {transform_indices = @transform_3, window_bounds = array<i64: 1, 1024, 512>}, {transform_indices = @transform_4, window_bounds = array<i64: 1, 1, 512>}, {transform_indices = @transform_5, window_bounds = array<i64: 1, 512, 128>}, {transform_indices = @transform_6, window_bounds = array<i64: 1, 1, 128>}, {transform_indices = @transform_7, window_bounds = array<i64: 1, 128, 128>}, {transform_indices = @transform_8, window_bounds = array<i64: 1, 1, 128>}, {transform_indices = @transform_9, window_bounds = array<i64: 1, 128, 128>}, {transform_indices = @transform_10, window_bounds = array<i64: 1, 1, 128>}, {transform_indices = @transform_11, window_bounds = array<i64: 1, 8, 128>}]} {
    %c0 = arith.constant 0 : index
    %c0_0 = arith.constant 0 : index
    %0 = vector.load %arg2[%c0, %c0_0] : memref<8x128xf32, #tpu.memory_space<vmem>>, vector<8x128xf32>
    %1 = arith.truncf %0 : vector<8x128xf32> to vector<8x128xbf16>
    %c0_1 = arith.constant 0 : index
    %c0_2 = arith.constant 0 : index
    %c0_3 = arith.constant 0 : index
    %2 = vector.load %arg3[%c0_1, %c0_2, %c0_3] : memref<1x128x1024xbf16, #tpu.memory_space<vmem>>, vector<1x128x1024xbf16>
    %3 = vector.shape_cast %2 : vector<1x128x1024xbf16> to vector<128x1024xbf16>
    %cst = arith.constant dense<0.000000e+00> : vector<8x1024xf32>
    %4 = tpu.matmul %1, %3, %cst {dimension_numbers = #tpu.dot_dimension_numbers<[1], [0], [0], [1], [0, 0, 1, 1], [], []>} : vector<8x128xbf16>, vector<128x1024xbf16>, vector<8x1024xf32> -> vector<8x1024xf32>
    %c0_4 = arith.constant 0 : index
    %c0_5 = arith.constant 0 : index
    %c0_6 = arith.constant 0 : index
    %5 = vector.load %arg4[%c0_4, %c0_5, %c0_6] : memref<1x1x1024xf32, #tpu.memory_space<vmem>>, vector<1x1x1024xf32>
    %6 = vector.shape_cast %5 : vector<1x1x1024xf32> to vector<1x1024xf32>
    %7 = vector.broadcast %6 : vector<1x1024xf32> to vector<8x1024xf32>
    %8 = arith.addf %4, %7 : vector<8x1024xf32>
    %cst_7 = arith.constant 0.000000e+00 : f32
    %9 = vector.broadcast %cst_7 : f32 to vector<8x1024xf32>
    %10 = arith.maximumf %8, %9 : vector<8x1024xf32>
    %11 = arith.truncf %10 : vector<8x1024xf32> to vector<8x1024xbf16>
    %c0_8 = arith.constant 0 : index
    %c0_9 = arith.constant 0 : index
    %c0_10 = arith.constant 0 : index
    %12 = vector.load %arg5[%c0_8, %c0_9, %c0_10] : memref<1x1024x512xbf16, #tpu.memory_space<vmem>>, vector<1x1024x512xbf16>
    %13 = vector.shape_cast %12 : vector<1x1024x512xbf16> to vector<1024x512xbf16>
    %cst_11 = arith.constant dense<0.000000e+00> : vector<8x512xf32>
    %14 = tpu.matmul %11, %13, %cst_11 {dimension_numbers = #tpu.dot_dimension_numbers<[1], [0], [0], [1], [0, 0, 1, 1], [], []>} : vector<8x1024xbf16>, vector<1024x512xbf16>, vector<8x512xf32> -> vector<8x512xf32>
    %c0_12 = arith.constant 0 : index
    %c0_13 = arith.constant 0 : index
    %c0_14 = arith.constant 0 : index
    %15 = vector.load %arg6[%c0_12, %c0_13, %c0_14] : memref<1x1x512xf32, #tpu.memory_space<vmem>>, vector<1x1x512xf32>
    %16 = vector.shape_cast %15 : vector<1x1x512xf32> to vector<1x512xf32>
    %17 = vector.broadcast %16 : vector<1x512xf32> to vector<8x512xf32>
    %18 = arith.addf %14, %17 : vector<8x512xf32>
    %cst_15 = arith.constant 0.000000e+00 : f32
    %19 = vector.broadcast %cst_15 : f32 to vector<8x512xf32>
    %20 = arith.maximumf %18, %19 : vector<8x512xf32>
    %21 = arith.truncf %20 : vector<8x512xf32> to vector<8x512xbf16>
    %c0_16 = arith.constant 0 : index
    %c0_17 = arith.constant 0 : index
    %c0_18 = arith.constant 0 : index
    %22 = vector.load %arg7[%c0_16, %c0_17, %c0_18] : memref<1x512x128xbf16, #tpu.memory_space<vmem>>, vector<1x512x128xbf16>
    %23 = vector.shape_cast %22 : vector<1x512x128xbf16> to vector<512x128xbf16>
    %cst_19 = arith.constant dense<0.000000e+00> : vector<8x128xf32>
    %24 = tpu.matmul %21, %23, %cst_19 {dimension_numbers = #tpu.dot_dimension_numbers<[1], [0], [0], [1], [0, 0, 1, 1], [], []>} : vector<8x512xbf16>, vector<512x128xbf16>, vector<8x128xf32> -> vector<8x128xf32>
    %c0_20 = arith.constant 0 : index
    %c0_21 = arith.constant 0 : index
    %c0_22 = arith.constant 0 : index
    %25 = vector.load %arg8[%c0_20, %c0_21, %c0_22] : memref<1x1x128xf32, #tpu.memory_space<vmem>>, vector<1x1x128xf32>
    %26 = vector.shape_cast %25 : vector<1x1x128xf32> to vector<1x128xf32>
    %27 = vector.broadcast %26 : vector<1x128xf32> to vector<8x128xf32>
    %28 = arith.addf %24, %27 : vector<8x128xf32>
    %cst_23 = arith.constant 0.000000e+00 : f32
    %29 = vector.broadcast %cst_23 : f32 to vector<8x128xf32>
    %30 = arith.maximumf %28, %29 : vector<8x128xf32>
    %31 = arith.truncf %30 : vector<8x128xf32> to vector<8x128xbf16>
    %c0_24 = arith.constant 0 : index
    %c0_25 = arith.constant 0 : index
    %c0_26 = arith.constant 0 : index
    %32 = vector.load %arg9[%c0_24, %c0_25, %c0_26] : memref<1x128x128xbf16, #tpu.memory_space<vmem>>, vector<1x128x128xbf16>
    %33 = vector.shape_cast %32 : vector<1x128x128xbf16> to vector<128x128xbf16>
    %cst_27 = arith.constant dense<0.000000e+00> : vector<8x128xf32>
    %34 = tpu.matmul %31, %33, %cst_27 {dimension_numbers = #tpu.dot_dimension_numbers<[1], [0], [0], [1], [0, 0, 1, 1], [], []>} : vector<8x128xbf16>, vector<128x128xbf16>, vector<8x128xf32> -> vector<8x128xf32>
    %c0_28 = arith.constant 0 : index
    %c0_29 = arith.constant 0 : index
    %c0_30 = arith.constant 0 : index
    %35 = vector.load %arg10[%c0_28, %c0_29, %c0_30] : memref<1x1x128xf32, #tpu.memory_space<vmem>>, vector<1x1x128xf32>
    %36 = vector.shape_cast %35 : vector<1x1x128xf32> to vector<1x128xf32>
    %37 = vector.broadcast %36 : vector<1x128xf32> to vector<8x128xf32>
    %38 = arith.addf %34, %37 : vector<8x128xf32>
    %cst_31 = arith.constant 0.000000e+00 : f32
    %39 = vector.broadcast %cst_31 : f32 to vector<8x128xf32>
    %40 = arith.maximumf %38, %39 : vector<8x128xf32>
    %41 = arith.truncf %40 : vector<8x128xf32> to vector<8x128xbf16>
    %c0_32 = arith.constant 0 : index
    %c0_33 = arith.constant 0 : index
    %c0_34 = arith.constant 0 : index
    %42 = vector.load %arg11[%c0_32, %c0_33, %c0_34] : memref<1x128x128xbf16, #tpu.memory_space<vmem>>, vector<1x128x128xbf16>
    %43 = vector.shape_cast %42 : vector<1x128x128xbf16> to vector<128x128xbf16>
    %cst_35 = arith.constant dense<0.000000e+00> : vector<8x128xf32>
    %44 = tpu.matmul %41, %43, %cst_35 {dimension_numbers = #tpu.dot_dimension_numbers<[1], [0], [0], [1], [0, 0, 1, 1], [], []>} : vector<8x128xbf16>, vector<128x128xbf16>, vector<8x128xf32> -> vector<8x128xf32>
    %c0_36 = arith.constant 0 : index
    %c0_37 = arith.constant 0 : index
    %c0_38 = arith.constant 0 : index
    %45 = vector.load %arg12[%c0_36, %c0_37, %c0_38] : memref<1x1x128xf32, #tpu.memory_space<vmem>>, vector<1x1x128xf32>
    %46 = vector.shape_cast %45 : vector<1x1x128xf32> to vector<1x128xf32>
    %47 = vector.broadcast %46 : vector<1x128xf32> to vector<8x128xf32>
    %48 = arith.addf %44, %47 : vector<8x128xf32>
    %c0_39 = arith.constant 0 : index
    %c0_40 = arith.constant 0 : index
    %c0_41 = arith.constant 0 : index
    %49 = vector.load %arg13[%c0_39, %c0_40, %c0_41] : memref<1x8x128xf32, #tpu.memory_space<vmem>>, vector<1x8x128xf32>
    %50 = vector.shape_cast %49 : vector<1x8x128xf32> to vector<8x128xf32>
    %51 = vector.shape_cast %48 : vector<8x128xf32> to vector<1x8x128xf32>
    tpu.vector_store %arg13[%c0_39, %c0_40, %c0_41], %51 {strides = array<i32>} : memref<1x8x128xf32, #tpu.memory_space<vmem>>, vector<1x8x128xf32>,
    return
  }
  func.func @transform_0(%arg0: i32, %arg1: i32) -> (i32, i32) {
    %c0_i32 = arith.constant 0 : i32
    %c0_i32_0 = arith.constant 0 : i32
    return %arg1, %c0_i32 : i32, i32
  }
  func.func @transform_1(%arg0: i32, %arg1: i32) -> (i32, i32, i32) {
    %c0_i32 = arith.constant 0 : i32
    %c0_i32_0 = arith.constant 0 : i32
    %c0_i32_1 = arith.constant 0 : i32
    return %arg0, %c0_i32, %c0_i32_0 : i32, i32, i32
  }
  func.func @transform_2(%arg0: i32, %arg1: i32) -> (i32, i32, i32) {
    %c0_i32 = arith.constant 0 : i32
    %c0_i32_0 = arith.constant 0 : i32
    %c0_i32_1 = arith.constant 0 : i32
    return %arg0, %c0_i32, %c0_i32_0 : i32, i32, i32
  }
  func.func @transform_3(%arg0: i32, %arg1: i32) -> (i32, i32, i32) {
    %c0_i32 = arith.constant 0 : i32
    %c0_i32_0 = arith.constant 0 : i32
    %c0_i32_1 = arith.constant 0 : i32
    return %arg0, %c0_i32, %c0_i32_0 : i32, i32, i32
  }
  func.func @transform_4(%arg0: i32, %arg1: i32) -> (i32, i32, i32) {
    %c0_i32 = arith.constant 0 : i32
    %c0_i32_0 = arith.constant 0 : i32
    %c0_i32_1 = arith.constant 0 : i32
    return %arg0, %c0_i32, %c0_i32_0 : i32, i32, i32
  }
  func.func @transform_5(%arg0: i32, %arg1: i32) -> (i32, i32, i32) {
    %c0_i32 = arith.constant 0 : i32
    %c0_i32_0 = arith.constant 0 : i32
    %c0_i32_1 = arith.constant 0 : i32
    return %arg0, %c0_i32, %c0_i32_0 : i32, i32, i32
  }
  func.func @transform_6(%arg0: i32, %arg1: i32) -> (i32, i32, i32) {
    %c0_i32 = arith.constant 0 : i32
    %c0_i32_0 = arith.constant 0 : i32
    %c0_i32_1 = arith.constant 0 : i32
    return %arg0, %c0_i32, %c0_i32_0 : i32, i32, i32
  }
  func.func @transform_7(%arg0: i32, %arg1: i32) -> (i32, i32, i32) {
    %c0_i32 = arith.constant 0 : i32
    %c0_i32_0 = arith.constant 0 : i32
    %c0_i32_1 = arith.constant 0 : i32
    return %arg0, %c0_i32, %c0_i32_0 : i32, i32, i32
  }
  func.func @transform_8(%arg0: i32, %arg1: i32) -> (i32, i32, i32) {
    %c0_i32 = arith.constant 0 : i32
    %c0_i32_0 = arith.constant 0 : i32
    %c0_i32_1 = arith.constant 0 : i32
    return %arg0, %c0_i32, %c0_i32_0 : i32, i32, i32
  }
  func.func @transform_9(%arg0: i32, %arg1: i32) -> (i32, i32, i32) {
    %c0_i32 = arith.constant 0 : i32
    %c0_i32_0 = arith.constant 0 : i32
    %c0_i32_1 = arith.constant 0 : i32
    return %arg0, %c0_i32, %c0_i32_0 : i32, i32, i32
  }
  func.func @transform_10(%arg0: i32, %arg1: i32) -> (i32, i32, i32) {
    %c0_i32 = arith.constant 0 : i32
    %c0_i32_0 = arith.constant 0 : i32
    %c0_i32_1 = arith.constant 0 : i32
    return %arg0, %c0_i32, %c0_i32_0 : i32, i32, i32
  }
  func.func @transform_11(%arg0: i32, %arg1: i32) -> (i32, i32, i32) {
    %c0_i32 = arith.constant 0 : i32
    %c0_i32_0 = arith.constant 0 : i32
    return %arg0, %arg1, %c0_i32 : i32, i32, i32
  }
}

</mosaic_0001>

<llo_original>
// kernel: tpu_custom_call.1
$region0: #{tpu_custom_call.1}
  #allocation0 [shape = 'u32[]', space=smem, size = 0x4, offset = 0x4, fixed_abs, tag = 'smem constant byte address 0x4 - core index']
  #allocation1 [shape = 'u32[144,128]{1,0:T(1,128)}', space=vmem, size = 0x12000, scoped, tag = 'internal scratch']
  %s0 = inlined_call_operand.hbm [shape: f32[8,128], index: 0, kind: input, shape index: {}]
  %s1 = inlined_call_operand.hbm [shape: bf16[1,128,1024], index: 1, kind: input, shape index: {}]
  %s2 = inlined_call_operand.hbm [shape: f32[1,1,1024], index: 2, kind: input, shape index: {}]
  %s3 = inlined_call_operand.hbm [shape: bf16[1,1024,512], index: 3, kind: input, shape index: {}]
  %s4 = inlined_call_operand.vmem [shape: f32[1,1,512], index: 4, kind: input, shape index: {}]
  %s5 = inlined_call_operand.hbm [shape: bf16[1,512,128], index: 5, kind: input, shape index: {}]
  %s6 = inlined_call_operand.vmem [shape: f32[1,1,128], index: 6, kind: input, shape index: {}]
  %s7 = inlined_call_operand.hbm [shape: bf16[1,128,128], index: 7, kind: input, shape index: {}]
  %s8 = inlined_call_operand.vmem [shape: f32[1,1,128], index: 8, kind: input, shape index: {}]
  %s9 = inlined_call_operand.hbm [shape: bf16[1,128,128], index: 9, kind: input, shape index: {}]
  %s10 = inlined_call_operand.vmem [shape: f32[1,1,128], index: 10, kind: input, shape index: {}]
  %s11 = inlined_call_operand.hbm [shape: f32[1,8,128], index: 11, kind: output, shape index: {}]
  %s12 = sld [smem:[#allocation0]]
  $region82: #{tpu_custom_call.1} parent=0
    _
  %s14 = ssub.s32 1, %s12
  %s15 = scalar_select 0, %s14, %s12
  $region1: #{tpu_custom_call.1} parent=0
    #allocation2 [shape = 'u8[4096]{0}', space=vmem, size = 0x1000, scoped, tag = 'input window, operand 0, single buffered']
    #allocation3 [shape = 's32[1]{0}', space=sflag, size = 0x4, scoped, tag = 'scoped memory for tpu_custom_call.1']
    #allocation4 [shape = 's32[1]{0}', space=sflag, size = 0x4, scoped, tag = 'scoped memory for tpu_custom_call.1']
    #allocation5 [shape = 'u8[262144]{0}', space=vmem, size = 0x40000, scoped, tag = 'input window, operand 1, single buffered']
    #allocation6 [shape = 's32[1]{0}', space=sflag, size = 0x4, scoped, tag = 'scoped memory for tpu_custom_call.1']
    #allocation7 [shape = 'u8[4096]{0}', space=vmem, size = 0x1000, scoped, tag = 'input window, operand 2, single buffered']
    #allocation8 [shape = 'u8[1048576]{0}', space=vmem, size = 0x100000, scoped, tag = 'input window, operand 3, single buffered']
    #allocation9 [shape = 's32[1]{0}', space=sflag, size = 0x4, scoped, tag = 'scoped memory for tpu_custom_call.1']
    #allocation10 [shape = 'u8[131072]{0}', space=vmem, size = 0x20000, scoped, tag = 'input window, operand 5, single buffered']
    #allocation11 [shape = 'u8[32768]{0}', space=vmem, size = 0x8000, scoped, tag = 'input window, operand 7, single buffered']
    #allocation12 [shape = 's32[1]{0}', space=sflag, size = 0x4, scoped, tag = 'scoped memory for tpu_custom_call.1']
    #allocation13 [shape = 'u8[32768]{0}', space=vmem, size = 0x8000, scoped, tag = 'input window, operand 9, single buffered']
    #allocation14 [shape = 'u8[4096]{0}', space=vmem, size = 0x1000, scoped, tag = 'output window, operand 0, single buffered']
    %16 = vsyncpa [#allocation3], 0
    %17 = vsyncpa [#allocation6], 0
    %18 = vsyncpa [#allocation9], 0
    %19 = vsyncpa [#allocation12], 0
    %20 = vsyncpa [#allocation4], 0
    // Predicated region
    $region2: #{tpu_custom_call.1} parent=1 // pred_check
      _
    $region3: #{tpu_custom_call.1} parent=1 // pred_check_branch
      %22 = sbr.rel (0) target = $region5
    $region4: #{tpu_custom_call.1} parent=1 // pred_region
      %s24 = ssub.s32 128, 128
      %25 = vsyncadd [#allocation3], %s24
      %s27 = sshll.u32 [#allocation2], 4
      %s28 = int_to_ptr.vmem [resolvable:$true] %s27
      %30 = dma.hbm_to_vmem [thread:$0]  %s0, 128, %s28, [#allocation3]
    $region5: #{tpu_custom_call.1} parent=1 // pred_fallthru
      _
    // Predicated region
    $region6: #{tpu_custom_call.1} parent=1 // pred_check
      _
    $region7: #{tpu_custom_call.1} parent=1 // pred_check_branch
      %32 = sbr.rel (0) target = $region9
    $region8: #{tpu_custom_call.1} parent=1 // pred_region
      %s34 = ssub.s32 8192, 8192
      %35 = vsyncadd [#allocation6], %s34
      %s36 = sshll.u32 [#allocation5], 4
      %s37 = int_to_ptr.vmem [resolvable:$true] %s36
      %42 = dma.hbm_to_vmem [thread:$0]  %s1, 8192, %s37, [#allocation6], 512, 512, 32
    $region9: #{tpu_custom_call.1} parent=1 // pred_fallthru
      _
    // Predicated region
    $region10: #{tpu_custom_call.1} parent=1 // pred_check
      _
    $region11: #{tpu_custom_call.1} parent=1 // pred_check_branch
      %44 = sbr.rel (0) target = $region13
    $region12: #{tpu_custom_call.1} parent=1 // pred_region
      %s46 = ssub.s32 128, 128
      %47 = vsyncadd [#allocation6], %s46
      %s49 = sshll.u32 [#allocation7], 4
      %s50 = int_to_ptr.vmem [resolvable:$true] %s49
      %52 = dma.hbm_to_vmem [thread:$0]  %s2, 128, %s50, [#allocation6]
    $region13: #{tpu_custom_call.1} parent=1 // pred_fallthru
      _
    // Predicated region
    $region14: #{tpu_custom_call.1} parent=1 // pred_check
      _
    $region15: #{tpu_custom_call.1} parent=1 // pred_check_branch
      %54 = sbr.rel (0) target = $region17
    $region16: #{tpu_custom_call.1} parent=1 // pred_region
      %s56 = ssub.s32 32768, 32768
      %57 = vsyncadd [#allocation9], %s56
      %s58 = sshll.u32 [#allocation8], 4
      %s59 = int_to_ptr.vmem [resolvable:$true] %s58
      %64 = dma.hbm_to_vmem [thread:$0]  %s3, 32768, %s59, [#allocation9], 256, 256, 16
    $region17: #{tpu_custom_call.1} parent=1 // pred_fallthru
      _
    // Predicated region
    $region18: #{tpu_custom_call.1} parent=1 // pred_check
      _
    $region19: #{tpu_custom_call.1} parent=1 // pred_check_branch
      %66 = sbr.rel (0) target = $region21
    $region20: #{tpu_custom_call.1} parent=1 // pred_region
      _
    $region21: #{tpu_custom_call.1} parent=1 // pred_fallthru
      _
    // Predicated region
    $region22: #{tpu_custom_call.1} parent=1 // pred_check
      _
    $region23: #{tpu_custom_call.1} parent=1 // pred_check_branch
      %68 = sbr.rel (0) target = $region25
    $region24: #{tpu_custom_call.1} parent=1 // pred_region
      %s70 = ssub.s32 4096, 4096
      %71 = vsyncadd [#allocation9], %s70
      %s72 = sshll.u32 [#allocation10], 4
      %s73 = int_to_ptr.vmem [resolvable:$true] %s72
      %78 = dma.hbm_to_vmem [thread:$0]  %s5, 4096, %s73, [#allocation9], 64, 64, 4
    $region25: #{tpu_custom_call.1} parent=1 // pred_fallthru
      _
    // Predicated region
    $region26: #{tpu_custom_call.1} parent=1 // pred_check
      _
    $region27: #{tpu_custom_call.1} parent=1 // pred_check_branch
      %80 = sbr.rel (0) target = $region29
    $region28: #{tpu_custom_call.1} parent=1 // pred_region
      _
    $region29: #{tpu_custom_call.1} parent=1 // pred_fallthru
      _
    // Predicated region
    $region30: #{tpu_custom_call.1} parent=1 // pred_check
      _
    $region31: #{tpu_custom_call.1} parent=1 // pred_check_branch
      %82 = sbr.rel (0) target = $region33
    $region32: #{tpu_custom_call.1} parent=1 // pred_region
      %s84 = ssub.s32 1024, 1024
      %85 = vsyncadd [#allocation12], %s84
      %s86 = sshll.u32 [#allocation11], 4
      %s87 = int_to_ptr.vmem [resolvable:$true] %s86
      %92 = dma.hbm_to_vmem [thread:$0]  %s7, 1024, %s87, [#allocation12], 64, 64, 4
    $region33: #{tpu_custom_call.1} parent=1 // pred_fallthru
      _
    // Predicated region
    $region34: #{tpu_custom_call.1} parent=1 // pred_check
      _
    $region35: #{tpu_custom_call.1} parent=1 // pred_check_branch
      %94 = sbr.rel (0) target = $region37
    $region36: #{tpu_custom_call.1} parent=1 // pred_region
      _
    $region37: #{tpu_custom_call.1} parent=1 // pred_fallthru
      _
    // Predicated region
    $region38: #{tpu_custom_call.1} parent=1 // pred_check
      _
    $region39: #{tpu_custom_call.1} parent=1 // pred_check_branch
      %96 = sbr.rel (0) target = $region41
    $region40: #{tpu_custom_call.1} parent=1 // pred_region
      %s98 = ssub.s32 1024, 1024
      %99 = vsyncadd [#allocation12], %s98
      %s100 = sshll.u32 [#allocation13], 4
      %s101 = int_to_ptr.vmem [resolvable:$true] %s100
      %106 = dma.hbm_to_vmem [thread:$0]  %s9, 1024, %s101, [#allocation12], 64, 64, 4
    $region41: #{tpu_custom_call.1} parent=1 // pred_fallthru
      _
    // Predicated region
    $region42: #{tpu_custom_call.1} parent=1 // pred_check
      _
    $region43: #{tpu_custom_call.1} parent=1 // pred_check_branch
      %108 = sbr.rel (0) target = $region45
    $region44: #{tpu_custom_call.1} parent=1 // pred_region
      _
    $region45: #{tpu_custom_call.1} parent=1 // pred_fallthru
      _
    // Predicated region
    $region46: #{tpu_custom_call.1} parent=1 // pred_check
      _
    $region47: #{tpu_custom_call.1} parent=1 // pred_check_branch
      %110 = sbr.rel (0) target = $region49
    $region48: #{tpu_custom_call.1} parent=1 // pred_region
      %111 = dma.done [#allocation3], 128
    $region49: #{tpu_custom_call.1} parent=1 // pred_fallthru
      _
    // Predicated region
    $region50: #{tpu_custom_call.1} parent=1 // pred_check
      _
    $region51: #{tpu_custom_call.1} parent=1 // pred_check_branch
      %113 = sbr.rel (0) target = $region53
    $region52: #{tpu_custom_call.1} parent=1 // pred_region
      %114 = dma.done [#allocation6], 8192
    $region53: #{tpu_custom_call.1} parent=1 // pred_fallthru
      _
    // Predicated region
    $region54: #{tpu_custom_call.1} parent=1 // pred_check
      _
    $region55: #{tpu_custom_call.1} parent=1 // pred_check_branch
      %116 = sbr.rel (0) target = $region57
    $region56: #{tpu_custom_call.1} parent=1 // pred_region
      %117 = dma.done [#allocation6], 128
    $region57: #{tpu_custom_call.1} parent=1 // pred_fallthru
      _
    // Predicated region
    $region58: #{tpu_custom_call.1} parent=1 // pred_check
      _
    $region59: #{tpu_custom_call.1} parent=1 // pred_check_branch
      %119 = sbr.rel (0) target = $region61
    $region60: #{tpu_custom_call.1} parent=1 // pred_region
      %120 = dma.done [#allocation9], 32768
    $region61: #{tpu_custom_call.1} parent=1 // pred_fallthru
      _
    // Predicated region
    $region62: #{tpu_custom_call.1} parent=1 // pred_check
      _
    $region63: #{tpu_custom_call.1} parent=1 // pred_check_branch
      %122 = sbr.rel (0) target = $region65
    $region64: #{tpu_custom_call.1} parent=1 // pred_region
      %123 = dma.done [#allocation9], 4096
    $region65: #{tpu_custom_call.1} parent=1 // pred_fallthru
      _
    // Predicated region
    $region66: #{tpu_custom_call.1} parent=1 // pred_check
      _
    $region67: #{tpu_custom_call.1} parent=1 // pred_check_branch
      %125 = sbr.rel (0) target = $region69
    $region68: #{tpu_custom_call.1} parent=1 // pred_region
      %126 = dma.done [#allocation12], 1024
    $region69: #{tpu_custom_call.1} parent=1 // pred_fallthru
      _
    // Predicated region
    $region70: #{tpu_custom_call.1} parent=1 // pred_check
      _
    $region71: #{tpu_custom_call.1} parent=1 // pred_check_branch
      %128 = sbr.rel (0) target = $region73
    $region72: #{tpu_custom_call.1} parent=1 // pred_region
      %129 = dma.done [#allocation12], 1024
    $region73: #{tpu_custom_call.1} parent=1 // pred_fallthru
      _
    %v131 = vld [vmem:[#allocation2] sm:$0xff]
    %v132 = vpack.c.bf16 %v131, %v131
    %v133 = vld [vmem:[#allocation5] sm:$0xff]
    %v134 = vld [vmem:[#allocation5 + $0x8] sm:$0xff]
    %v135 = vld [vmem:[#allocation5 + $0x10] sm:$0xff]
    %v136 = vld [vmem:[#allocation5 + $0x18] sm:$0xff]
    %v137 = vld [vmem:[#allocation5 + $0x20] sm:$0xff]
    %v138 = vld [vmem:[#allocation5 + $0x28] sm:$0xff]
    %v139 = vld [vmem:[#allocation5 + $0x30] sm:$0xff]
    %v140 = vld [vmem:[#allocation5 + $0x38] sm:$0xff]
    %v141 = vld [vmem:[#allocation5 + $0x40] sm:$0xff]
    %v142 = vld [vmem:[#allocation5 + $0x48] sm:$0xff]
    %v143 = vld [vmem:[#allocation5 + $0x50] sm:$0xff]
    %v144 = vld [vmem:[#allocation5 + $0x58] sm:$0xff]
    %v145 = vld [vmem:[#allocation5 + $0x60] sm:$0xff]
    %v146 = vld [vmem:[#allocation5 + $0x68] sm:$0xff]
    %v147 = vld [vmem:[#allocation5 + $0x70] sm:$0xff]
    %v148 = vld [vmem:[#allocation5 + $0x78] sm:$0xff]
    %v149 = vld [vmem:[#allocation5 + $0x80] sm:$0xff]
    %v150 = vld [vmem:[#allocation5 + $0x88] sm:$0xff]
    %v151 = vld [vmem:[#allocation5 + $0x90] sm:$0xff]
    %v152 = vld [vmem:[#allocation5 + $0x98] sm:$0xff]
    %v153 = vld [vmem:[#allocation5 + $0xa0] sm:$0xff]
    %v154 = vld [vmem:[#allocation5 + $0xa8] sm:$0xff]
    %v155 = vld [vmem:[#allocation5 + $0xb0] sm:$0xff]
    %v156 = vld [vmem:[#allocation5 + $0xb8] sm:$0xff]
    %v157 = vld [vmem:[#allocation5 + $0xc0] sm:$0xff]
    %v158 = vld [vmem:[#allocation5 + $0xc8] sm:$0xff]
    %v159 = vld [vmem:[#allocation5 + $0xd0] sm:$0xff]
    %v160 = vld [vmem:[#allocation5 + $0xd8] sm:$0xff]
    %v161 = vld [vmem:[#allocation5 + $0xe0] sm:$0xff]
    %v162 = vld [vmem:[#allocation5 + $0xe8] sm:$0xff]
    %v163 = vld [vmem:[#allocation5 + $0xf0] sm:$0xff]
    %v164 = vld [vmem:[#allocation5 + $0xf8] sm:$0xff]
    %v165 = vld [vmem:[#allocation5 + $0x100] sm:$0xff]
    %v166 = vld [vmem:[#allocation5 + $0x108] sm:$0xff]
    %v167 = vld [vmem:[#allocation5 + $0x110] sm:$0xff]
    %v168 = vld [vmem:[#allocation5 + $0x118] sm:$0xff]
    %v169 = vld [vmem:[#allocation5 + $0x120] sm:$0xff]
    %v170 = vld [vmem:[#allocation5 + $0x128] sm:$0xff]
    %v171 = vld [vmem:[#allocation5 + $0x130] sm:$0xff]
    %v172 = vld [vmem:[#allocation5 + $0x138] sm:$0xff]
    %v173 = vld [vmem:[#allocation5 + $0x140] sm:$0xff]
    %v174 = vld [vmem:[#allocation5 + $0x148] sm:$0xff]
    %v175 = vld [vmem:[#allocation5 + $0x150] sm:$0xff]
    %v176 = vld [vmem:[#allocation5 + $0x158] sm:$0xff]
    %v177 = vld [vmem:[#allocation5 + $0x160] sm:$0xff]
    %v178 = vld [vmem:[#allocation5 + $0x168] sm:$0xff]
    %v179 = vld [vmem:[#allocation5 + $0x170] sm:$0xff]
    %v180 = vld [vmem:[#allocation5 + $0x178] sm:$0xff]
    %v181 = vld [vmem:[#allocation5 + $0x180] sm:$0xff]
    %v182 = vld [vmem:[#allocation5 + $0x188] sm:$0xff]
    %v183 = vld [vmem:[#allocation5 + $0x190] sm:$0xff]
    %v184 = vld [vmem:[#allocation5 + $0x198] sm:$0xff]
    %v185 = vld [vmem:[#allocation5 + $0x1a0] sm:$0xff]
    %v186 = vld [vmem:[#allocation5 + $0x1a8] sm:$0xff]
    %v187 = vld [vmem:[#allocation5 + $0x1b0] sm:$0xff]
    %v188 = vld [vmem:[#allocation5 + $0x1b8] sm:$0xff]
    %v189 = vld [vmem:[#allocation5 + $0x1c0] sm:$0xff]
    %v190 = vld [vmem:[#allocation5 + $0x1c8] sm:$0xff]
    %v191 = vld [vmem:[#allocation5 + $0x1d0] sm:$0xff]
    %v192 = vld [vmem:[#allocation5 + $0x1d8] sm:$0xff]
    %v193 = vld [vmem:[#allocation5 + $0x1e0] sm:$0xff]
    %v194 = vld [vmem:[#allocation5 + $0x1e8] sm:$0xff]
    %v195 = vld [vmem:[#allocation5 + $0x1f0] sm:$0xff]
    %v196 = vld [vmem:[#allocation5 + $0x1f8] sm:$0xff]
    %v197 = vld [vmem:[#allocation7] sm:$0xff]
    %v199 = vlaneseq
    %v200 = vshrl.u32 %v199, 7
    %v201 = vsub.s32 0, %v200
    %v202 = vrot.slane %v197, %v201
    %v203 = vlaneseq
    %v204 = vshrl.u32 %v203, 7
    %v205 = vsub.s32 1, %v204
    %v206 = vrot.slane %v197, %v205
    %v207 = vlaneseq
    %v208 = vshrl.u32 %v207, 7
    %v209 = vsub.s32 2, %v208
    %v210 = vrot.slane %v197, %v209
    %v211 = vlaneseq
    %v212 = vshrl.u32 %v211, 7
    %v213 = vsub.s32 3, %v212
    %v214 = vrot.slane %v197, %v213
    %v215 = vlaneseq
    %v216 = vshrl.u32 %v215, 7
    %v217 = vsub.s32 4, %v216
    %v218 = vrot.slane %v197, %v217
    %v219 = vlaneseq
    %v220 = vshrl.u32 %v219, 7
    %v221 = vsub.s32 5, %v220
    %v222 = vrot.slane %v197, %v221
    %v223 = vlaneseq
    %v224 = vshrl.u32 %v223, 7
    %v225 = vsub.s32 6, %v224
    %v226 = vrot.slane %v197, %v225
    %v227 = vlaneseq
    %v228 = vshrl.u32 %v227, 7
    %v229 = vsub.s32 7, %v228
    %v230 = vrot.slane %v197, %v229
    %v303 = vunpack.c.l.b16 %v133
    %v304 = vunpack.c.h.b16 %v133
    %v305 = vunpack.c.l.b16 %v134
    %v306 = vunpack.c.h.b16 %v134
    %v307 = vunpack.c.l.b16 %v135
    %v308 = vunpack.c.h.b16 %v135
    %v309 = vunpack.c.l.b16 %v136
    %v310 = vunpack.c.h.b16 %v136
    %v311 = vunpack.c.l.b16 %v137
    %v312 = vunpack.c.h.b16 %v137
    %v313 = vunpack.c.l.b16 %v138
    %v314 = vunpack.c.h.b16 %v138
    %v315 = vunpack.c.l.b16 %v139
    %v316 = vunpack.c.h.b16 %v139
    %v317 = vunpack.c.l.b16 %v140
    %v318 = vunpack.c.h.b16 %v140
    %v319 = vunpack.c.l.b16 %v141
    %v320 = vunpack.c.h.b16 %v141
    %v321 = vunpack.c.l.b16 %v142
    %v322 = vunpack.c.h.b16 %v142
    %v323 = vunpack.c.l.b16 %v143
    %v324 = vunpack.c.h.b16 %v143
    %v325 = vunpack.c.l.b16 %v144
    %v326 = vunpack.c.h.b16 %v144
    %v327 = vunpack.c.l.b16 %v145
    %v328 = vunpack.c.h.b16 %v145
    %v329 = vunpack.c.l.b16 %v146
    %v330 = vunpack.c.h.b16 %v146
    %v331 = vunpack.c.l.b16 %v147
    %v332 = vunpack.c.h.b16 %v147
    %v333 = vunpack.c.l.b16 %v148
    %v334 = vunpack.c.h.b16 %v148
    %v335 = vunpack.c.l.b16 %v149
    %v336 = vunpack.c.h.b16 %v149
    %v337 = vunpack.c.l.b16 %v150
    %v338 = vunpack.c.h.b16 %v150
    %v339 = vunpack.c.l.b16 %v151
    %v340 = vunpack.c.h.b16 %v151
    %v341 = vunpack.c.l.b16 %v152
    %v342 = vunpack.c.h.b16 %v152
    %v343 = vunpack.c.l.b16 %v153
    %v344 = vunpack.c.h.b16 %v153
    %v345 = vunpack.c.l.b16 %v154
    %v346 = vunpack.c.h.b16 %v154
    %v347 = vunpack.c.l.b16 %v155
    %v348 = vunpack.c.h.b16 %v155
    %v349 = vunpack.c.l.b16 %v156
    %v350 = vunpack.c.h.b16 %v156
    %v351 = vunpack.c.l.b16 %v157
    %v352 = vunpack.c.h.b16 %v157
    %v353 = vunpack.c.l.b16 %v158
    %v354 = vunpack.c.h.b16 %v158
    %v355 = vunpack.c.l.b16 %v159
    %v356 = vunpack.c.h.b16 %v159
    %v357 = vunpack.c.l.b16 %v160
    %v358 = vunpack.c.h.b16 %v160
    %v359 = vunpack.c.l.b16 %v161
    %v360 = vunpack.c.h.b16 %v161
    %v361 = vunpack.c.l.b16 %v162
    %v362 = vunpack.c.h.b16 %v162
    %v363 = vunpack.c.l.b16 %v163
    %v364 = vunpack.c.h.b16 %v163
    %v365 = vunpack.c.l.b16 %v164
    %v366 = vunpack.c.h.b16 %v164
    %v367 = vunpack.c.l.b16 %v165
    %v368 = vunpack.c.h.b16 %v165
    %v369 = vunpack.c.l.b16 %v166
    %v370 = vunpack.c.h.b16 %v166
    %v371 = vunpack.c.l.b16 %v167
    %v372 = vunpack.c.h.b16 %v167
    %v373 = vunpack.c.l.b16 %v168
    %v374 = vunpack.c.h.b16 %v168
    %v375 = vunpack.c.l.b16 %v169
    %v376 = vunpack.c.h.b16 %v169
    %v377 = vunpack.c.l.b16 %v170
    %v378 = vunpack.c.h.b16 %v170
    %v379 = vunpack.c.l.b16 %v171
    %v380 = vunpack.c.h.b16 %v171
    %v381 = vunpack.c.l.b16 %v172
    %v382 = vunpack.c.h.b16 %v172
    %v383 = vunpack.c.l.b16 %v173
    %v384 = vunpack.c.h.b16 %v173
    %v385 = vunpack.c.l.b16 %v174
    %v386 = vunpack.c.h.b16 %v174
    %v387 = vunpack.c.l.b16 %v175
    %v388 = vunpack.c.h.b16 %v175
    %v389 = vunpack.c.l.b16 %v176
    %v390 = vunpack.c.h.b16 %v176
    %v391 = vunpack.c.l.b16 %v177
    %v392 = vunpack.c.h.b16 %v177
    %v393 = vunpack.c.l.b16 %v178
    %v394 = vunpack.c.h.b16 %v178
    %v395 = vunpack.c.l.b16 %v179
    %v396 = vunpack.c.h.b16 %v179
    %v397 = vunpack.c.l.b16 %v180
    %v398 = vunpack.c.h.b16 %v180
    %v399 = vunpack.c.l.b16 %v181
    %v400 = vunpack.c.h.b16 %v181
    %v401 = vunpack.c.l.b16 %v182
    %v402 = vunpack.c.h.b16 %v182
    %v403 = vunpack.c.l.b16 %v183
    %v404 = vunpack.c.h.b16 %v183
    %v405 = vunpack.c.l.b16 %v184
    %v406 = vunpack.c.h.b16 %v184
    %v407 = vunpack.c.l.b16 %v185
    %v408 = vunpack.c.h.b16 %v185
    %v409 = vunpack.c.l.b16 %v186
    %v410 = vunpack.c.h.b16 %v186
    %v411 = vunpack.c.l.b16 %v187
    %v412 = vunpack.c.h.b16 %v187
    %v413 = vunpack.c.l.b16 %v188
    %v414 = vunpack.c.h.b16 %v188
    %v415 = vunpack.c.l.b16 %v189
    %v416 = vunpack.c.h.b16 %v189
    %v417 = vunpack.c.l.b16 %v190
    %v418 = vunpack.c.h.b16 %v190
    %v419 = vunpack.c.l.b16 %v191
    %v420 = vunpack.c.h.b16 %v191
    %v421 = vunpack.c.l.b16 %v192
    %v422 = vunpack.c.h.b16 %v192
    %v423 = vunpack.c.l.b16 %v193
    %v424 = vunpack.c.h.b16 %v193
    %v425 = vunpack.c.l.b16 %v194
    %v426 = vunpack.c.h.b16 %v194
    %v427 = vunpack.c.l.b16 %v195
    %v428 = vunpack.c.h.b16 %v195
    %v429 = vunpack.c.l.b16 %v196
    %v430 = vunpack.c.h.b16 %v196
    %v431 = vpack.c.b16 %v311, %v303
    %v432 = vpack.c.b16 %v312, %v304
    %v433 = vpack.c.b16 %v313, %v305
    %v434 = vpack.c.b16 %v314, %v306
    %v435 = vpack.c.b16 %v315, %v307
    %v436 = vpack.c.b16 %v316, %v308
    %v437 = vpack.c.b16 %v317, %v309
    %v438 = vpack.c.b16 %v318, %v310
    %v439 = vpack.c.b16 %v327, %v319
    %v440 = vpack.c.b16 %v328, %v320
    %v441 = vpack.c.b16 %v329, %v321
    %v442 = vpack.c.b16 %v330, %v322
    %v443 = vpack.c.b16 %v331, %v323
    %v444 = vpack.c.b16 %v332, %v324
    %v445 = vpack.c.b16 %v333, %v325
    %v446 = vpack.c.b16 %v334, %v326
    %v447 = vpack.c.b16 %v343, %v335
    %v448 = vpack.c.b16 %v344, %v336
    %v449 = vpack.c.b16 %v345, %v337
    %v450 = vpack.c.b16 %v346, %v338
    %v451 = vpack.c.b16 %v347, %v339
    %v452 = vpack.c.b16 %v348, %v340
    %v453 = vpack.c.b16 %v349, %v341
    %v454 = vpack.c.b16 %v350, %v342
    %v455 = vpack.c.b16 %v359, %v351
    %v456 = vpack.c.b16 %v360, %v352
    %v457 = vpack.c.b16 %v361, %v353
    %v458 = vpack.c.b16 %v362, %v354
    %v459 = vpack.c.b16 %v363, %v355
    %v460 = vpack.c.b16 %v364, %v356
    %v461 = vpack.c.b16 %v365, %v357
    %v462 = vpack.c.b16 %v366, %v358
    %v463 = vpack.c.b16 %v375, %v367
    %v464 = vpack.c.b16 %v376, %v368
    %v465 = vpack.c.b16 %v377, %v369
    %v466 = vpack.c.b16 %v378, %v370
    %v467 = vpack.c.b16 %v379, %v371
    %v468 = vpack.c.b16 %v380, %v372
    %v469 = vpack.c.b16 %v381, %v373
    %v470 = vpack.c.b16 %v382, %v374
    %v471 = vpack.c.b16 %v391, %v383
    %v472 = vpack.c.b16 %v392, %v384
    %v473 = vpack.c.b16 %v393, %v385
    %v474 = vpack.c.b16 %v394, %v386
    %v475 = vpack.c.b16 %v395, %v387
    %v476 = vpack.c.b16 %v396, %v388
    %v477 = vpack.c.b16 %v397, %v389
    %v478 = vpack.c.b16 %v398, %v390
    %v479 = vpack.c.b16 %v407, %v399
    %v480 = vpack.c.b16 %v408, %v400
    %v481 = vpack.c.b16 %v409, %v401
    %v482 = vpack.c.b16 %v410, %v402
    %v483 = vpack.c.b16 %v411, %v403
    %v484 = vpack.c.b16 %v412, %v404
    %v485 = vpack.c.b16 %v413, %v405
    %v486 = vpack.c.b16 %v414, %v406
    %v487 = vpack.c.b16 %v423, %v415
    %v488 = vpack.c.b16 %v424, %v416
    %v489 = vpack.c.b16 %v425, %v417
    %v490 = vpack.c.b16 %v426, %v418
    %v491 = vpack.c.b16 %v427, %v419
    %v492 = vpack.c.b16 %v428, %v420
    %v493 = vpack.c.b16 %v429, %v421
    %v494 = vpack.c.b16 %v430, %v422
    %559 = vmatprep.subr.bf16.mxu0 %v432
    %560 = vmatpush1.bf16.msra.mxu0 %v431
    %561 = vmatprep.subr.bf16.mxu0 %v440
    %562 = vmatpush1.bf16.msra.mxu0 %v439
    %563 = vmatprep.subr.bf16.mxu0 %v448
    %564 = vmatpush1.bf16.msra.mxu0 %v447
    %565 = vmatprep.subr.bf16.mxu0 %v456
    %566 = vmatpush1.bf16.msra.mxu0 %v455
    %567 = vmatprep.subr.bf16.mxu0 %v464
    %568 = vmatpush1.bf16.msra.mxu0 %v463
    %569 = vmatprep.subr.bf16.mxu0 %v472
    %570 = vmatpush1.bf16.msra.mxu0 %v471
    %571 = vmatprep.subr.bf16.mxu0 %v480
    %572 = vmatpush1.bf16.msra.mxu0 %v479
    %573 = vmatprep.subr.bf16.mxu0 %v488
    %574 = vmatpush1.bf16.msra.mxu0 %v487
    %575 = vmatprep.subr.bf16.mxu0 0
    %576 = vmatpush1.bf16.msra.mxu0 0
    %577 = vmatprep.subr.bf16.mxu0 0
    %578 = vmatpush1.bf16.msra.mxu0 0
    %579 = vmatprep.subr.bf16.mxu0 0
    %580 = vmatpush1.bf16.msra.mxu0 0
    %581 = vmatprep.subr.bf16.mxu0 0
    %582 = vmatpush1.bf16.msra.mxu0 0
    %583 = vmatprep.subr.bf16.mxu0 0
    %584 = vmatpush1.bf16.msra.mxu0 0
    %585 = vmatprep.subr.bf16.mxu0 0
    %586 = vmatpush1.bf16.msra.mxu0 0
    %587 = vmatprep.subr.bf16.mxu0 0
    %588 = vmatpush1.bf16.msra.mxu0 0
    %589 = vmatprep.subr.bf16.mxu0 0
    %590 = vmatpush1.bf16.msra.mxu0 0
    %591 = vmatprep.mubr.bf16.mxu0 0
    %592 = vmatmul.mubr.bf16.gmra.mrb[0].mxu0 %v132
    %v593 = vpop.f32.mrb[0].mxu0
    %v594 = vadd.f32 %v202, %v593
    %v595 = vpop.f32.mrb[0].mxu0
    %v596 = vadd.f32 %v206, %v595
    %v597 = vpop.f32.mrb[0].mxu0
    %v598 = vpop.f32.mrb[0].mxu0
    %599 = vdwg.mxu0
    %600 = vmatprep.subr.bf16.mxu0 %v434
    %601 = vmatpush1.bf16.msra.mxu0 %v433
    %602 = vmatprep.subr.bf16.mxu0 %v442
    %603 = vmatpush1.bf16.msra.mxu0 %v441
    %604 = vmatprep.subr.bf16.mxu0 %v450
    %605 = vmatpush1.bf16.msra.mxu0 %v449
    %606 = vmatprep.subr.bf16.mxu0 %v458
    %607 = vmatpush1.bf16.msra.mxu0 %v457
    %608 = vmatprep.subr.bf16.mxu0 %v466
    %609 = vmatpush1.bf16.msra.mxu0 %v465
    %610 = vmatprep.subr.bf16.mxu0 %v474
    %611 = vmatpush1.bf16.msra.mxu0 %v473
    %612 = vmatprep.subr.bf16.mxu0 %v482
    %613 = vmatpush1.bf16.msra.mxu0 %v481
    %614 = vmatprep.subr.bf16.mxu0 %v490
    %615 = vmatpush1.bf16.msra.mxu0 %v489
    %616 = vmatprep.subr.bf16.mxu0 0
    %617 = vmatpush1.bf16.msra.mxu0 0
    %618 = vmatprep.subr.bf16.mxu0 0
    %619 = vmatpush1.bf16.msra.mxu0 0
    %620 = vmatprep.subr.bf16.mxu0 0
    %621 = vmatpush1.bf16.msra.mxu0 0
    %622 = vmatprep.subr.bf16.mxu0 0
    %623 = vmatpush1.bf16.msra.mxu0 0
    %624 = vmatprep.subr.bf16.mxu0 0
    %625 = vmatpush1.bf16.msra.mxu0 0
    %626 = vmatprep.subr.bf16.mxu0 0
    %627 = vmatpush1.bf16.msra.mxu0 0
    %628 = vmatprep.subr.bf16.mxu0 0
    %629 = vmatpush1.bf16.msra.mxu0 0
    %630 = vmatprep.subr.bf16.mxu0 0
    %631 = vmatpush1.bf16.msra.mxu0 0
    %632 = vmatprep.mubr.bf16.mxu0 0
    %633 = vmatmul.mubr.bf16.gmra.mrb[0].mxu0 %v132
    %v634 = vpop.f32.mrb[0].mxu0
    %v635 = vadd.f32 %v210, %v634
    %v636 = vpop.f32.mrb[0].mxu0
    %v637 = vadd.f32 %v214, %v636
    %v638 = vpop.f32.mrb[0].mxu0
    %v639 = vpop.f32.mrb[0].mxu0
    %640 = vdwg.mxu0
    %641 = vmatprep.subr.bf16.mxu0 %v436
    %642 = vmatpush1.bf16.msra.mxu0 %v435
    %643 = vmatprep.subr.bf16.mxu0 %v444
    %644 = vmatpush1.bf16.msra.mxu0 %v443
    %645 = vmatprep.subr.bf16.mxu0 %v452
    %646 = vmatpush1.bf16.msra.mxu0 %v451
    %647 = vmatprep.subr.bf16.mxu0 %v460
    %648 = vmatpush1.bf16.msra.mxu0 %v459
    %649 = vmatprep.subr.bf16.mxu0 %v468
    %650 = vmatpush1.bf16.msra.mxu0 %v467
    %651 = vmatprep.subr.bf16.mxu0 %v476
    %652 = vmatpush1.bf16.msra.mxu0 %v475
    %653 = vmatprep.subr.bf16.mxu0 %v484
    %654 = vmatpush1.bf16.msra.mxu0 %v483
    %655 = vmatprep.subr.bf16.mxu0 %v492
    %656 = vmatpush1.bf16.msra.mxu0 %v491
    %657 = vmatprep.subr.bf16.mxu0 0
    %658 = vmatpush1.bf16.msra.mxu0 0
    %659 = vmatprep.subr.bf16.mxu0 0
    %660 = vmatpush1.bf16.msra.mxu0 0
    %661 = vmatprep.subr.bf16.mxu0 0
    %662 = vmatpush1.bf16.msra.mxu0 0
    %663 = vmatprep.subr.bf16.mxu0 0
    %664 = vmatpush1.bf16.msra.mxu0 0
    %665 = vmatprep.subr.bf16.mxu0 0
    %666 = vmatpush1.bf16.msra.mxu0 0
    %667 = vmatprep.subr.bf16.mxu0 0
    %668 = vmatpush1.bf16.msra.mxu0 0
    %669 = vmatprep.subr.bf16.mxu0 0
    %670 = vmatpush1.bf16.msra.mxu0 0
    %671 = vmatprep.subr.bf16.mxu0 0
    %672 = vmatpush1.bf16.msra.mxu0 0
    %673 = vmatprep.mubr.bf16.mxu0 0
    %674 = vmatmul.mubr.bf16.gmra.mrb[0].mxu0 %v132
    %v675 = vpop.f32.mrb[0].mxu0
    %v676 = vadd.f32 %v218, %v675
    %v677 = vpop.f32.mrb[0].mxu0
    %v678 = vadd.f32 %v222, %v677
    %v679 = vpop.f32.mrb[0].mxu0
    %v680 = vpop.f32.mrb[0].mxu0
    %681 = vdwg.mxu0
    %682 = vmatprep.subr.bf16.mxu0 %v438
    %683 = vmatpush1.bf16.msra.mxu0 %v437
    %684 = vmatprep.subr.bf16.mxu0 %v446
    %685 = vmatpush1.bf16.msra.mxu0 %v445
    %686 = vmatprep.subr.bf16.mxu0 %v454
    %687 = vmatpush1.bf16.msra.mxu0 %v453
    %688 = vmatprep.subr.bf16.mxu0 %v462
    %689 = vmatpush1.bf16.msra.mxu0 %v461
    %690 = vmatprep.subr.bf16.mxu0 %v470
    %691 = vmatpush1.bf16.msra.mxu0 %v469
    %692 = vmatprep.subr.bf16.mxu0 %v478
    %693 = vmatpush1.bf16.msra.mxu0 %v477
    %694 = vmatprep.subr.bf16.mxu0 %v486
    %695 = vmatpush1.bf16.msra.mxu0 %v485
    %696 = vmatprep.subr.bf16.mxu0 %v494
    %697 = vmatpush1.bf16.msra.mxu0 %v493
    %698 = vmatprep.subr.bf16.mxu0 0
    %699 = vmatpush1.bf16.msra.mxu0 0
    %700 = vmatprep.subr.bf16.mxu0 0
    %701 = vmatpush1.bf16.msra.mxu0 0
    %702 = vmatprep.subr.bf16.mxu0 0
    %703 = vmatpush1.bf16.msra.mxu0 0
    %704 = vmatprep.subr.bf16.mxu0 0
    %705 = vmatpush1.bf16.msra.mxu0 0
    %706 = vmatprep.subr.bf16.mxu0 0
    %707 = vmatpush1.bf16.msra.mxu0 0
    %708 = vmatprep.subr.bf16.mxu0 0
    %709 = vmatpush1.bf16.msra.mxu0 0
    %710 = vmatprep.subr.bf16.mxu0 0
    %711 = vmatpush1.bf16.msra.mxu0 0
    %712 = vmatprep.subr.bf16.mxu0 0
    %713 = vmatpush1.bf16.msra.mxu0 0
    %714 = vmatprep.mubr.bf16.mxu0 0
    %715 = vmatmul.mubr.bf16.gmra.mrb[0].mxu0 %v132
    %v716 = vpop.f32.mrb[0].mxu0
    %v717 = vadd.f32 %v226, %v716
    %v718 = vpop.f32.mrb[0].mxu0
    %v719 = vadd.f32 %v230, %v718
    %v720 = vpop.f32.mrb[0].mxu0
    %v721 = vpop.f32.mrb[0].mxu0
    %722 = vdwg.mxu0
    %v723 = vmax.f32 %v594, 0.0
    %v724 = vmax.f32 %v596, 0.0
    %v725 = vmax.f32 %v635, 0.0
    %v726 = vmax.f32 %v637, 0.0
    %v727 = vmax.f32 %v676, 0.0
    %v728 = vmax.f32 %v678, 0.0
    %v729 = vmax.f32 %v717, 0.0
    %v730 = vmax.f32 %v719, 0.0
    %v731 = vpack.c.bf16 %v723, %v723
    %v732 = vpack.c.bf16 %v724, %v724
    %v733 = vpack.c.bf16 %v725, %v725
    %v734 = vpack.c.bf16 %v726, %v726
    %v735 = vpack.c.bf16 %v727, %v727
    %v736 = vpack.c.bf16 %v728, %v728
    %v737 = vpack.c.bf16 %v729, %v729
    %v738 = vpack.c.bf16 %v730, %v730
    %v739 = vld [vmem:[#allocation8] sm:$0xff]
    %v740 = vld [vmem:[#allocation8 + $0x8] sm:$0xff]
    %v741 = vld [vmem:[#allocation8 + $0x10] sm:$0xff]
    %v742 = vld [vmem:[#allocation8 + $0x18] sm:$0xff]
    %v743 = vld [vmem:[#allocation8 + $0x20] sm:$0xff]
    %v744 = vld [vmem:[#allocation8 + $0x28] sm:$0xff]
    %v745 = vld [vmem:[#allocation8 + $0x30] sm:$0xff]
    %v746 = vld [vmem:[#allocation8 + $0x38] sm:$0xff]
    %v747 = vld [vmem:[#allocation8 + $0x40] sm:$0xff]
    %v748 = vld [vmem:[#allocation8 + $0x48] sm:$0xff]
    %v749 = vld [vmem:[#allocation8 + $0x50] sm:$0xff]
    %v750 = vld [vmem:[#allocation8 + $0x58] sm:$0xff]
    %v751 = vld [vmem:[#allocation8 + $0x60] sm:$0xff]
    %v752 = vld [vmem:[#allocation8 + $0x68] sm:$0xff]
    %v753 = vld [vmem:[#allocation8 + $0x70] sm:$0xff]
    %v754 = vld [vmem:[#allocation8 + $0x78] sm:$0xff]
    %v755 = vld [vmem:[#allocation8 + $0x80] sm:$0xff]
    %v756 = vld [vmem:[#allocation8 + $0x88] sm:$0xff]
    %v757 = vld [vmem:[#allocation8 + $0x90] sm:$0xff]
    %v758 = vld [vmem:[#allocation8 + $0x98] sm:$0xff]
    %v759 = vld [vmem:[#allocation8 + $0xa0] sm:$0xff]
    %v760 = vld [vmem:[#allocation8 + $0xa8] sm:$0xff]
    %v761 = vld [vmem:[#allocation8 + $0xb0] sm:$0xff]
    %v762 = vld [vmem:[#allocation8 + $0xb8] sm:$0xff]
    %v763 = vld [vmem:[#allocation8 + $0xc0] sm:$0xff]
    %v764 = vld [vmem:[#allocation8 + $0xc8] sm:$0xff]
    %v765 = vld [vmem:[#allocation8 + $0xd0] sm:$0xff]
    %v766 = vld [vmem:[#allocation8 + $0xd8] sm:$0xff]
    %v767 = vld [vmem:[#allocation8 + $0xe0] sm:$0xff]
    %v768 = vld [vmem:[#allocation8 + $0xe8] sm:$0xff]
    %v769 = vld [vmem:[#allocation8 + $0xf0] sm:$0xff]
    %v770 = vld [vmem:[#allocation8 + $0xf8] sm:$0xff]
    %v771 = vld [vmem:[#allocation8 + $0x100] sm:$0xff]
    %v772 = vld [vmem:[#allocation8 + $0x108] sm:$0xff]
    %v773 = vld [vmem:[#allocation8 + $0x110] sm:$0xff]
    %v774 = vld [vmem:[#allocation8 + $0x118] sm:$0xff]
    %v775 = vld [vmem:[#allocation8 + $0x120] sm:$0xff]
    %v776 = vld [vmem:[#allocation8 + $0x128] sm:$0xff]
    %v777 = vld [vmem:[#allocation8 + $0x130] sm:$0xff]
    %v778 = vld [vmem:[#allocation8 + $0x138] sm:$0xff]
    %v779 = vld [vmem:[#allocation8 + $0x140] sm:$0xff]
    %v780 = vld [vmem:[#allocation8 + $0x148] sm:$0xff]
    %v781 = vld [vmem:[#allocation8 + $0x150] sm:$0xff]
    %v782 = vld [vmem:[#allocation8 + $0x158] sm:$0xff]
    %v783 = vld [vmem:[#allocation8 + $0x160] sm:$0xff]
    %v784 = vld [vmem:[#allocation8 + $0x168] sm:$0xff]
    %v785 = vld [vmem:[#allocation8 + $0x170] sm:$0xff]
    %v786 = vld [vmem:[#allocation8 + $0x178] sm:$0xff]
    %v787 = vld [vmem:[#allocation8 + $0x180] sm:$0xff]
    %v788 = vld [vmem:[#allocation8 + $0x188] sm:$0xff]
    %v789 = vld [vmem:[#allocation8 + $0x190] sm:$0xff]
    %v790 = vld [vmem:[#allocation8 + $0x198] sm:$0xff]
    %v791 = vld [vmem:[#allocation8 + $0x1a0] sm:$0xff]
    %v792 = vld [vmem:[#allocation8 + $0x1a8] sm:$0xff]
    %v793 = vld [vmem:[#allocation8 + $0x1b0] sm:$0xff]
    %v794 = vld [vmem:[#allocation8 + $0x1b8] sm:$0xff]
    %v795 = vld [vmem:[#allocation8 + $0x1c0] sm:$0xff]
    %v796 = vld [vmem:[#allocation8 + $0x1c8] sm:$0xff]
    %v797 = vld [vmem:[#allocation8 + $0x1d0] sm:$0xff]
    %v798 = vld [vmem:[#allocation8 + $0x1d8] sm:$0xff]
    %v799 = vld [vmem:[#allocation8 + $0x1e0] sm:$0xff]
    %v800 = vld [vmem:[#allocation8 + $0x1e8] sm:$0xff]
    %v801 = vld [vmem:[#allocation8 + $0x1f0] sm:$0xff]
    %v802 = vld [vmem:[#allocation8 + $0x1f8] sm:$0xff]
    %v803 = vld [vmem:[#allocation8 + $0x200] sm:$0xff]
    %v804 = vld [vmem:[#allocation8 + $0x208] sm:$0xff]
    %v805 = vld [vmem:[#allocation8 + $0x210] sm:$0xff]
    %v806 = vld [vmem:[#allocation8 + $0x218] sm:$0xff]
    %v807 = vld [vmem:[#allocation8 + $0x220] sm:$0xff]
    %v808 = vld [vmem:[#allocation8 + $0x228] sm:$0xff]
    %v809 = vld [vmem:[#allocation8 + $0x230] sm:$0xff]
    %v810 = vld [vmem:[#allocation8 + $0x238] sm:$0xff]
    %v811 = vld [vmem:[#allocation8 + $0x240] sm:$0xff]
    %v812 = vld [vmem:[#allocation8 + $0x248] sm:$0xff]
    %v813 = vld [vmem:[#allocation8 + $0x250] sm:$0xff]
    %v814 = vld [vmem:[#allocation8 + $0x258] sm:$0xff]
    %v815 = vld [vmem:[#allocation8 + $0x260] sm:$0xff]
    %v816 = vld [vmem:[#allocation8 + $0x268] sm:$0xff]
    %v817 = vld [vmem:[#allocation8 + $0x270] sm:$0xff]
    %v818 = vld [vmem:[#allocation8 + $0x278] sm:$0xff]
    %v819 = vld [vmem:[#allocation8 + $0x280] sm:$0xff]
    %v820 = vld [vmem:[#allocation8 + $0x288] sm:$0xff]
    %v821 = vld [vmem:[#allocation8 + $0x290] sm:$0xff]
    %v822 = vld [vmem:[#allocation8 + $0x298] sm:$0xff]
    %v823 = vld [vmem:[#allocation8 + $0x2a0] sm:$0xff]
    %v824 = vld [vmem:[#allocation8 + $0x2a8] sm:$0xff]
    %v825 = vld [vmem:[#allocation8 + $0x2b0] sm:$0xff]
    %v826 = vld [vmem:[#allocation8 + $0x2b8] sm:$0xff]
    %v827 = vld [vmem:[#allocation8 + $0x2c0] sm:$0xff]
    %v828 = vld [vmem:[#allocation8 + $0x2c8] sm:$0xff]
    %v829 = vld [vmem:[#allocation8 + $0x2d0] sm:$0xff]
    %v830 = vld [vmem:[#allocation8 + $0x2d8] sm:$0xff]
    %v831 = vld [vmem:[#allocation8 + $0x2e0] sm:$0xff]
    %v832 = vld [vmem:[#allocation8 + $0x2e8] sm:$0xff]
    %v833 = vld [vmem:[#allocation8 + $0x2f0] sm:$0xff]
    %v834 = vld [vmem:[#allocation8 + $0x2f8] sm:$0xff]
    %v835 = vld [vmem:[#allocation8 + $0x300] sm:$0xff]
    %v836 = vld [vmem:[#allocation8 + $0x308] sm:$0xff]
    %v837 = vld [vmem:[#allocation8 + $0x310] sm:$0xff]
    %v838 = vld [vmem:[#allocation8 + $0x318] sm:$0xff]
    %v839 = vld [vmem:[#allocation8 + $0x320] sm:$0xff]
    %v840 = vld [vmem:[#allocation8 + $0x328] sm:$0xff]
    %v841 = vld [vmem:[#allocation8 + $0x330] sm:$0xff]
    %v842 = vld [vmem:[#allocation8 + $0x338] sm:$0xff]
    %v843 = vld [vmem:[#allocation8 + $0x340] sm:$0xff]
    %v844 = vld [vmem:[#allocation8 + $0x348] sm:$0xff]
    %v845 = vld [vmem:[#allocation8 + $0x350] sm:$0xff]
    %v846 = vld [vmem:[#allocation8 + $0x358] sm:$0xff]
    %v847 = vld [vmem:[#allocation8 + $0x360] sm:$0xff]
    %v848 = vld [vmem:[#allocation8 + $0x368] sm:$0xff]
    %v849 = vld [vmem:[#allocation8 + $0x370] sm:$0xff]
    %v850 = vld [vmem:[#allocation8 + $0x378] sm:$0xff]
    %v851 = vld [vmem:[#allocation8 + $0x380] sm:$0xff]
    %v852 = vld [vmem:[#allocation8 + $0x388] sm:$0xff]
    %v853 = vld [vmem:[#allocation8 + $0x390] sm:$0xff]
    %v854 = vld [vmem:[#allocation8 + $0x398] sm:$0xff]
    %v855 = vld [vmem:[#allocation8 + $0x3a0] sm:$0xff]
    %v856 = vld [vmem:[#allocation8 + $0x3a8] sm:$0xff]
    %v857 = vld [vmem:[#allocation8 + $0x3b0] sm:$0xff]
    %v858 = vld [vmem:[#allocation8 + $0x3b8] sm:$0xff]
    %v859 = vld [vmem:[#allocation8 + $0x3c0] sm:$0xff]
    %v860 = vld [vmem:[#allocation8 + $0x3c8] sm:$0xff]
    %v861 = vld [vmem:[#allocation8 + $0x3d0] sm:$0xff]
    %v862 = vld [vmem:[#allocation8 + $0x3d8] sm:$0xff]
    %v863 = vld [vmem:[#allocation8 + $0x3e0] sm:$0xff]
    %v864 = vld [vmem:[#allocation8 + $0x3e8] sm:$0xff]
    %v865 = vld [vmem:[#allocation8 + $0x3f0] sm:$0xff]
    %v866 = vld [vmem:[#allocation8 + $0x3f8] sm:$0xff]
    %v867 = vld [vmem:[#allocation8 + $0x400] sm:$0xff]
    %v868 = vld [vmem:[#allocation8 + $0x408] sm:$0xff]
    %v869 = vld [vmem:[#allocation8 + $0x410] sm:$0xff]
    %v870 = vld [vmem:[#allocation8 + $0x418] sm:$0xff]
    %v871 = vld [vmem:[#allocation8 + $0x420] sm:$0xff]
    %v872 = vld [vmem:[#allocation8 + $0x428] sm:$0xff]
    %v873 = vld [vmem:[#allocation8 + $0x430] sm:$0xff]
    %v874 = vld [vmem:[#allocation8 + $0x438] sm:$0xff]
    %v875 = vld [vmem:[#allocation8 + $0x440] sm:$0xff]
    %v876 = vld [vmem:[#allocation8 + $0x448] sm:$0xff]
    %v877 = vld [vmem:[#allocation8 + $0x450] sm:$0xff]
    %v878 = vld [vmem:[#allocation8 + $0x458] sm:$0xff]
    %v879 = vld [vmem:[#allocation8 + $0x460] sm:$0xff]
    %v880 = vld [vmem:[#allocation8 + $0x468] sm:$0xff]
    %v881 = vld [vmem:[#allocation8 + $0x470] sm:$0xff]
    %v882 = vld [vmem:[#allocation8 + $0x478] sm:$0xff]
    %v883 = vld [vmem:[#allocation8 + $0x480] sm:$0xff]
    %v884 = vld [vmem:[#allocation8 + $0x488] sm:$0xff]
    %v885 = vld [vmem:[#allocation8 + $0x490] sm:$0xff]
    %v886 = vld [vmem:[#allocation8 + $0x498] sm:$0xff]
    %v887 = vld [vmem:[#allocation8 + $0x4a0] sm:$0xff]
    %v888 = vld [vmem:[#allocation8 + $0x4a8] sm:$0xff]
    %v889 = vld [vmem:[#allocation8 + $0x4b0] sm:$0xff]
    %v890 = vld [vmem:[#allocation8 + $0x4b8] sm:$0xff]
    %v891 = vld [vmem:[#allocation8 + $0x4c0] sm:$0xff]
    %v892 = vld [vmem:[#allocation8 + $0x4c8] sm:$0xff]
    %v893 = vld [vmem:[#allocation8 + $0x4d0] sm:$0xff]
    %v894 = vld [vmem:[#allocation8 + $0x4d8] sm:$0xff]
    %v895 = vld [vmem:[#allocation8 + $0x4e0] sm:$0xff]
    %v896 = vld [vmem:[#allocation8 + $0x4e8] sm:$0xff]
    %v897 = vld [vmem:[#allocation8 + $0x4f0] sm:$0xff]
    %v898 = vld [vmem:[#allocation8 + $0x4f8] sm:$0xff]
    %v899 = vld [vmem:[#allocation8 + $0x500] sm:$0xff]
    %v900 = vld [vmem:[#allocation8 + $0x508] sm:$0xff]
    %v901 = vld [vmem:[#allocation8 + $0x510] sm:$0xff]
    %v902 = vld [vmem:[#allocation8 + $0x518] sm:$0xff]
    %v903 = vld [vmem:[#allocation8 + $0x520] sm:$0xff]
    %v904 = vld [vmem:[#allocation8 + $0x528] sm:$0xff]
    %v905 = vld [vmem:[#allocation8 + $0x530] sm:$0xff]
    %v906 = vld [vmem:[#allocation8 + $0x538] sm:$0xff]
    %v907 = vld [vmem:[#allocation8 + $0x540] sm:$0xff]
    %v908 = vld [vmem:[#allocation8 + $0x548] sm:$0xff]
    %v909 = vld [vmem:[#allocation8 + $0x550] sm:$0xff]
    %v910 = vld [vmem:[#allocation8 + $0x558] sm:$0xff]
    %v911 = vld [vmem:[#allocation8 + $0x560] sm:$0xff]
    %v912 = vld [vmem:[#allocation8 + $0x568] sm:$0xff]
    %v913 = vld [vmem:[#allocation8 + $0x570] sm:$0xff]
    %v914 = vld [vmem:[#allocation8 + $0x578] sm:$0xff]
    %v915 = vld [vmem:[#allocation8 + $0x580] sm:$0xff]
    %v916 = vld [vmem:[#allocation8 + $0x588] sm:$0xff]
    %v917 = vld [vmem:[#allocation8 + $0x590] sm:$0xff]
    %v918 = vld [vmem:[#allocation8 + $0x598] sm:$0xff]
    %v919 = vld [vmem:[#allocation8 + $0x5a0] sm:$0xff]
    %v920 = vld [vmem:[#allocation8 + $0x5a8] sm:$0xff]
    %v921 = vld [vmem:[#allocation8 + $0x5b0] sm:$0xff]
    %v922 = vld [vmem:[#allocation8 + $0x5b8] sm:$0xff]
    %v923 = vld [vmem:[#allocation8 + $0x5c0] sm:$0xff]
    %v924 = vld [vmem:[#allocation8 + $0x5c8] sm:$0xff]
    %v925 = vld [vmem:[#allocation8 + $0x5d0] sm:$0xff]
    %v926 = vld [vmem:[#allocation8 + $0x5d8] sm:$0xff]
    %v927 = vld [vmem:[#allocation8 + $0x5e0] sm:$0xff]
    %v928 = vld [vmem:[#allocation8 + $0x5e8] sm:$0xff]
    %v929 = vld [vmem:[#allocation8 + $0x5f0] sm:$0xff]
    %v930 = vld [vmem:[#allocation8 + $0x5f8] sm:$0xff]
    %v931 = vld [vmem:[#allocation8 + $0x600] sm:$0xff]
    %v932 = vld [vmem:[#allocation8 + $0x608] sm:$0xff]
    %v933 = vld [vmem:[#allocation8 + $0x610] sm:$0xff]
    %v934 = vld [vmem:[#allocation8 + $0x618] sm:$0xff]
    %v935 = vld [vmem:[#allocation8 + $0x620] sm:$0xff]
    %v936 = vld [vmem:[#allocation8 + $0x628] sm:$0xff]
    %v937 = vld [vmem:[#allocation8 + $0x630] sm:$0xff]
    %v938 = vld [vmem:[#allocation8 + $0x638] sm:$0xff]
    %v939 = vld [vmem:[#allocation8 + $0x640] sm:$0xff]
    %v940 = vld [vmem:[#allocation8 + $0x648] sm:$0xff]
    %v941 = vld [vmem:[#allocation8 + $0x650] sm:$0xff]
    %v942 = vld [vmem:[#allocation8 + $0x658] sm:$0xff]
    %v943 = vld [vmem:[#allocation8 + $0x660] sm:$0xff]
    %v944 = vld [vmem:[#allocation8 + $0x668] sm:$0xff]
    %v945 = vld [vmem:[#allocation8 + $0x670] sm:$0xff]
    %v946 = vld [vmem:[#allocation8 + $0x678] sm:$0xff]
    %v947 = vld [vmem:[#allocation8 + $0x680] sm:$0xff]
    %v948 = vld [vmem:[#allocation8 + $0x688] sm:$0xff]
    %v949 = vld [vmem:[#allocation8 + $0x690] sm:$0xff]
    %v950 = vld [vmem:[#allocation8 + $0x698] sm:$0xff]
    %v951 = vld [vmem:[#allocation8 + $0x6a0] sm:$0xff]
    %v952 = vld [vmem:[#allocation8 + $0x6a8] sm:$0xff]
    %v953 = vld [vmem:[#allocation8 + $0x6b0] sm:$0xff]
    %v954 = vld [vmem:[#allocation8 + $0x6b8] sm:$0xff]
    %v955 = vld [vmem:[#allocation8 + $0x6c0] sm:$0xff]
    %v956 = vld [vmem:[#allocation8 + $0x6c8] sm:$0xff]
    %v957 = vld [vmem:[#allocation8 + $0x6d0] sm:$0xff]
    %v958 = vld [vmem:[#allocation8 + $0x6d8] sm:$0xff]
    %v959 = vld [vmem:[#allocation8 + $0x6e0] sm:$0xff]
    %v960 = vld [vmem:[#allocation8 + $0x6e8] sm:$0xff]
    %v961 = vld [vmem:[#allocation8 + $0x6f0] sm:$0xff]
    %v962 = vld [vmem:[#allocation8 + $0x6f8] sm:$0xff]
    %v963 = vld [vmem:[#allocation8 + $0x700] sm:$0xff]
    %v964 = vld [vmem:[#allocation8 + $0x708] sm:$0xff]
    %v965 = vld [vmem:[#allocation8 + $0x710] sm:$0xff]
    %v966 = vld [vmem:[#allocation8 + $0x718] sm:$0xff]
    %v967 = vld [vmem:[#allocation8 + $0x720] sm:$0xff]
    %v968 = vld [vmem:[#allocation8 + $0x728] sm:$0xff]
    %v969 = vld [vmem:[#allocation8 + $0x730] sm:$0xff]
    %v970 = vld [vmem:[#allocation8 + $0x738] sm:$0xff]
    %v971 = vld [vmem:[#allocation8 + $0x740] sm:$0xff]
    %v972 = vld [vmem:[#allocation8 + $0x748] sm:$0xff]
    %v973 = vld [vmem:[#allocation8 + $0x750] sm:$0xff]
    %v974 = vld [vmem:[#allocation8 + $0x758] sm:$0xff]
    %v975 = vld [vmem:[#allocation8 + $0x760] sm:$0xff]
    %v976 = vld [vmem:[#allocation8 + $0x768] sm:$0xff]
    %v977 = vld [vmem:[#allocation8 + $0x770] sm:$0xff]
    %v978 = vld [vmem:[#allocation8 + $0x778] sm:$0xff]
    %v979 = vld [vmem:[#allocation8 + $0x780] sm:$0xff]
    %v980 = vld [vmem:[#allocation8 + $0x788] sm:$0xff]
    %v981 = vld [vmem:[#allocation8 + $0x790] sm:$0xff]
    %v982 = vld [vmem:[#allocation8 + $0x798] sm:$0xff]
    %v983 = vld [vmem:[#allocation8 + $0x7a0] sm:$0xff]
    %v984 = vld [vmem:[#allocation8 + $0x7a8] sm:$0xff]
    %v985 = vld [vmem:[#allocation8 + $0x7b0] sm:$0xff]
    %v986 = vld [vmem:[#allocation8 + $0x7b8] sm:$0xff]
    %v987 = vld [vmem:[#allocation8 + $0x7c0] sm:$0xff]
    %v988 = vld [vmem:[#allocation8 + $0x7c8] sm:$0xff]
    %v989 = vld [vmem:[#allocation8 + $0x7d0] sm:$0xff]
    %v990 = vld [vmem:[#allocation8 + $0x7d8] sm:$0xff]
    %v991 = vld [vmem:[#allocation8 + $0x7e0] sm:$0xff]
    %v992 = vld [vmem:[#allocation8 + $0x7e8] sm:$0xff]
    %v993 = vld [vmem:[#allocation8 + $0x7f0] sm:$0xff]
    %v994 = vld [vmem:[#allocation8 + $0x7f8] sm:$0xff]
    %v995 = vld [vmem:[%s4] sm:$0xf]
    %v997 = vlaneseq
    %v998 = vshrl.u32 %v997, 7
    %v999 = vsub.s32 0, %v998
    %v1000 = vrot.slane %v995, %v999
    %v1001 = vlaneseq
    %v1002 = vshrl.u32 %v1001, 7
    %v1003 = vsub.s32 1, %v1002
    %v1004 = vrot.slane %v995, %v1003
    %v1005 = vlaneseq
    %v1006 = vshrl.u32 %v1005, 7
    %v1007 = vsub.s32 2, %v1006
    %v1008 = vrot.slane %v995, %v1007
    %v1009 = vlaneseq
    %v1010 = vshrl.u32 %v1009, 7
    %v1011 = vsub.s32 3, %v1010
    %v1012 = vrot.slane %v995, %v1011
    %v1273 = vunpack.c.l.b16 %v739
    %v1274 = vunpack.c.h.b16 %v739
    %v1275 = vunpack.c.l.b16 %v740
    %v1276 = vunpack.c.h.b16 %v740
    %v1277 = vunpack.c.l.b16 %v741
    %v1278 = vunpack.c.h.b16 %v741
    %v1279 = vunpack.c.l.b16 %v742
    %v1280 = vunpack.c.h.b16 %v742
    %v1281 = vunpack.c.l.b16 %v743
    %v1282 = vunpack.c.h.b16 %v743
    %v1283 = vunpack.c.l.b16 %v744
    %v1284 = vunpack.c.h.b16 %v744
    %v1285 = vunpack.c.l.b16 %v745
    %v1286 = vunpack.c.h.b16 %v745
    %v1287 = vunpack.c.l.b16 %v746
    %v1288 = vunpack.c.h.b16 %v746
    %v1289 = vunpack.c.l.b16 %v747
    %v1290 = vunpack.c.h.b16 %v747
    %v1291 = vunpack.c.l.b16 %v748
    %v1292 = vunpack.c.h.b16 %v748
    %v1293 = vunpack.c.l.b16 %v749
    %v1294 = vunpack.c.h.b16 %v749
    %v1295 = vunpack.c.l.b16 %v750
    %v1296 = vunpack.c.h.b16 %v750
    %v1297 = vunpack.c.l.b16 %v751
    %v1298 = vunpack.c.h.b16 %v751
    %v1299 = vunpack.c.l.b16 %v752
    %v1300 = vunpack.c.h.b16 %v752
    %v1301 = vunpack.c.l.b16 %v753
    %v1302 = vunpack.c.h.b16 %v753
    %v1303 = vunpack.c.l.b16 %v754
    %v1304 = vunpack.c.h.b16 %v754
    %v1305 = vunpack.c.l.b16 %v755
    %v1306 = vunpack.c.h.b16 %v755
    %v1307 = vunpack.c.l.b16 %v756
    %v1308 = vunpack.c.h.b16 %v756
    %v1309 = vunpack.c.l.b16 %v757
    %v1310 = vunpack.c.h.b16 %v757
    %v1311 = vunpack.c.l.b16 %v758
    %v1312 = vunpack.c.h.b16 %v758
    %v1313 = vunpack.c.l.b16 %v759
    %v1314 = vunpack.c.h.b16 %v759
    %v1315 = vunpack.c.l.b16 %v760
    %v1316 = vunpack.c.h.b16 %v760
    %v1317 = vunpack.c.l.b16 %v761
    %v1318 = vunpack.c.h.b16 %v761
    %v1319 = vunpack.c.l.b16 %v762
    %v1320 = vunpack.c.h.b16 %v762
    %v1321 = vunpack.c.l.b16 %v763
    %v1322 = vunpack.c.h.b16 %v763
    %v1323 = vunpack.c.l.b16 %v764
    %v1324 = vunpack.c.h.b16 %v764
    %v1325 = vunpack.c.l.b16 %v765
    %v1326 = vunpack.c.h.b16 %v765
    %v1327 = vunpack.c.l.b16 %v766
    %v1328 = vunpack.c.h.b16 %v766
    %v1329 = vunpack.c.l.b16 %v767
    %v1330 = vunpack.c.h.b16 %v767
    %v1331 = vunpack.c.l.b16 %v768
    %v1332 = vunpack.c.h.b16 %v768
    %v1333 = vunpack.c.l.b16 %v769
    %v1334 = vunpack.c.h.b16 %v769
    %v1335 = vunpack.c.l.b16 %v770
    %v1336 = vunpack.c.h.b16 %v770
    %v1337 = vunpack.c.l.b16 %v771
    %v1338 = vunpack.c.h.b16 %v771
    %v1339 = vunpack.c.l.b16 %v772
    %v1340 = vunpack.c.h.b16 %v772
    %v1341 = vunpack.c.l.b16 %v773
    %v1342 = vunpack.c.h.b16 %v773
    %v1343 = vunpack.c.l.b16 %v774
    %v1344 = vunpack.c.h.b16 %v774
    %v1345 = vunpack.c.l.b16 %v775
    %v1346 = vunpack.c.h.b16 %v775
    %v1347 = vunpack.c.l.b16 %v776
    %v1348 = vunpack.c.h.b16 %v776
    %v1349 = vunpack.c.l.b16 %v777
    %v1350 = vunpack.c.h.b16 %v777
    %v1351 = vunpack.c.l.b16 %v778
    %v1352 = vunpack.c.h.b16 %v778
    %v1353 = vunpack.c.l.b16 %v779
    %v1354 = vunpack.c.h.b16 %v779
    %v1355 = vunpack.c.l.b16 %v780
    %v1356 = vunpack.c.h.b16 %v780
    %v1357 = vunpack.c.l.b16 %v781
    %v1358 = vunpack.c.h.b16 %v781
    %v1359 = vunpack.c.l.b16 %v782
    %v1360 = vunpack.c.h.b16 %v782
    %v1361 = vunpack.c.l.b16 %v783
    %v1362 = vunpack.c.h.b16 %v783
    %v1363 = vunpack.c.l.b16 %v784
    %v1364 = vunpack.c.h.b16 %v784
    %v1365 = vunpack.c.l.b16 %v785
    %v1366 = vunpack.c.h.b16 %v785
    %v1367 = vunpack.c.l.b16 %v786
    %v1368 = vunpack.c.h.b16 %v786
    %v1369 = vunpack.c.l.b16 %v787
    %v1370 = vunpack.c.h.b16 %v787
    %v1371 = vunpack.c.l.b16 %v788
    %v1372 = vunpack.c.h.b16 %v788
    %v1373 = vunpack.c.l.b16 %v789
    %v1374 = vunpack.c.h.b16 %v789
    %v1375 = vunpack.c.l.b16 %v790
    %v1376 = vunpack.c.h.b16 %v790
    %v1377 = vunpack.c.l.b16 %v791
    %v1378 = vunpack.c.h.b16 %v791
    %v1379 = vunpack.c.l.b16 %v792
    %v1380 = vunpack.c.h.b16 %v792
    %v1381 = vunpack.c.l.b16 %v793
    %v1382 = vunpack.c.h.b16 %v793
    %v1383 = vunpack.c.l.b16 %v794
    %v1384 = vunpack.c.h.b16 %v794
    %v1385 = vunpack.c.l.b16 %v795
    %v1386 = vunpack.c.h.b16 %v795
    %v1387 = vunpack.c.l.b16 %v796
    %v1388 = vunpack.c.h.b16 %v796
    %v1389 = vunpack.c.l.b16 %v797
    %v1390 = vunpack.c.h.b16 %v797
    %v1391 = vunpack.c.l.b16 %v798
    %v1392 = vunpack.c.h.b16 %v798
    %v1393 = vunpack.c.l.b16 %v799
    %v1394 = vunpack.c.h.b16 %v799
    %v1395 = vunpack.c.l.b16 %v800
    %v1396 = vunpack.c.h.b16 %v800
    %v1397 = vunpack.c.l.b16 %v801
    %v1398 = vunpack.c.h.b16 %v801
    %v1399 = vunpack.c.l.b16 %v802
    %v1400 = vunpack.c.h.b16 %v802
    %v1401 = vunpack.c.l.b16 %v803
    %v1402 = vunpack.c.h.b16 %v803
    %v1403 = vunpack.c.l.b16 %v804
    %v1404 = vunpack.c.h.b16 %v804
    %v1405 = vunpack.c.l.b16 %v805
    %v1406 = vunpack.c.h.b16 %v805
    %v1407 = vunpack.c.l.b16 %v806
    %v1408 = vunpack.c.h.b16 %v806
    %v1409 = vunpack.c.l.b16 %v807
    %v1410 = vunpack.c.h.b16 %v807
    %v1411 = vunpack.c.l.b16 %v808
    %v1412 = vunpack.c.h.b16 %v808
    %v1413 = vunpack.c.l.b16 %v809
    %v1414 = vunpack.c.h.b16 %v809
    %v1415 = vunpack.c.l.b16 %v810
    %v1416 = vunpack.c.h.b16 %v810
    %v1417 = vunpack.c.l.b16 %v811
    %v1418 = vunpack.c.h.b16 %v811
    %v1419 = vunpack.c.l.b16 %v812
    %v1420 = vunpack.c.h.b16 %v812
    %v1421 = vunpack.c.l.b16 %v813
    %v1422 = vunpack.c.h.b16 %v813
    %v1423 = vunpack.c.l.b16 %v814
    %v1424 = vunpack.c.h.b16 %v814
    %v1425 = vunpack.c.l.b16 %v815
    %v1426 = vunpack.c.h.b16 %v815
    %v1427 = vunpack.c.l.b16 %v816
    %v1428 = vunpack.c.h.b16 %v816
    %v1429 = vunpack.c.l.b16 %v817
    %v1430 = vunpack.c.h.b16 %v817
    %v1431 = vunpack.c.l.b16 %v818
    %v1432 = vunpack.c.h.b16 %v818
    %v1433 = vunpack.c.l.b16 %v819
    %v1434 = vunpack.c.h.b16 %v819
    %v1435 = vunpack.c.l.b16 %v820
    %v1436 = vunpack.c.h.b16 %v820
    %v1437 = vunpack.c.l.b16 %v821
    %v1438 = vunpack.c.h.b16 %v821
    %v1439 = vunpack.c.l.b16 %v822
    %v1440 = vunpack.c.h.b16 %v822
    %v1441 = vunpack.c.l.b16 %v823
    %v1442 = vunpack.c.h.b16 %v823
    %v1443 = vunpack.c.l.b16 %v824
    %v1444 = vunpack.c.h.b16 %v824
    %v1445 = vunpack.c.l.b16 %v825
    %v1446 = vunpack.c.h.b16 %v825
    %v1447 = vunpack.c.l.b16 %v826
    %v1448 = vunpack.c.h.b16 %v826
    %v1449 = vunpack.c.l.b16 %v827
    %v1450 = vunpack.c.h.b16 %v827
    %v1451 = vunpack.c.l.b16 %v828
    %v1452 = vunpack.c.h.b16 %v828
    %v1453 = vunpack.c.l.b16 %v829
    %v1454 = vunpack.c.h.b16 %v829
    %v1455 = vunpack.c.l.b16 %v830
    %v1456 = vunpack.c.h.b16 %v830
    %v1457 = vunpack.c.l.b16 %v831
    %v1458 = vunpack.c.h.b16 %v831
    %v1459 = vunpack.c.l.b16 %v832
    %v1460 = vunpack.c.h.b16 %v832
    %v1461 = vunpack.c.l.b16 %v833
    %v1462 = vunpack.c.h.b16 %v833
    %v1463 = vunpack.c.l.b16 %v834
    %v1464 = vunpack.c.h.b16 %v834
    %v1465 = vunpack.c.l.b16 %v835
    %v1466 = vunpack.c.h.b16 %v835
    %v1467 = vunpack.c.l.b16 %v836
    %v1468 = vunpack.c.h.b16 %v836
    %v1469 = vunpack.c.l.b16 %v837
    %v1470 = vunpack.c.h.b16 %v837
    %v1471 = vunpack.c.l.b16 %v838
    %v1472 = vunpack.c.h.b16 %v838
    %v1473 = vunpack.c.l.b16 %v839
    %v1474 = vunpack.c.h.b16 %v839
    %v1475 = vunpack.c.l.b16 %v840
    %v1476 = vunpack.c.h.b16 %v840
    %v1477 = vunpack.c.l.b16 %v841
    %v1478 = vunpack.c.h.b16 %v841
    %v1479 = vunpack.c.l.b16 %v842
    %v1480 = vunpack.c.h.b16 %v842
    %v1481 = vunpack.c.l.b16 %v843
    %v1482 = vunpack.c.h.b16 %v843
    %v1483 = vunpack.c.l.b16 %v844
    %v1484 = vunpack.c.h.b16 %v844
    %v1485 = vunpack.c.l.b16 %v845
    %v1486 = vunpack.c.h.b16 %v845
    %v1487 = vunpack.c.l.b16 %v846
    %v1488 = vunpack.c.h.b16 %v846
    %v1489 = vunpack.c.l.b16 %v847
    %v1490 = vunpack.c.h.b16 %v847
    %v1491 = vunpack.c.l.b16 %v848
    %v1492 = vunpack.c.h.b16 %v848
    %v1493 = vunpack.c.l.b16 %v849
    %v1494 = vunpack.c.h.b16 %v849
    %v1495 = vunpack.c.l.b16 %v850
    %v1496 = vunpack.c.h.b16 %v850
    %v1497 = vunpack.c.l.b16 %v851
    %v1498 = vunpack.c.h.b16 %v851
    %v1499 = vunpack.c.l.b16 %v852
    %v1500 = vunpack.c.h.b16 %v852
    %v1501 = vunpack.c.l.b16 %v853
    %v1502 = vunpack.c.h.b16 %v853
    %v1503 = vunpack.c.l.b16 %v854
    %v1504 = vunpack.c.h.b16 %v854
    %v1505 = vunpack.c.l.b16 %v855
    %v1506 = vunpack.c.h.b16 %v855
    %v1507 = vunpack.c.l.b16 %v856
    %v1508 = vunpack.c.h.b16 %v856
    %v1509 = vunpack.c.l.b16 %v857
    %v1510 = vunpack.c.h.b16 %v857
    %v1511 = vunpack.c.l.b16 %v858
    %v1512 = vunpack.c.h.b16 %v858
    %v1513 = vunpack.c.l.b16 %v859
    %v1514 = vunpack.c.h.b16 %v859
    %v1515 = vunpack.c.l.b16 %v860
    %v1516 = vunpack.c.h.b16 %v860
    %v1517 = vunpack.c.l.b16 %v861
    %v1518 = vunpack.c.h.b16 %v861
    %v1519 = vunpack.c.l.b16 %v862
    %v1520 = vunpack.c.h.b16 %v862
    %v1521 = vunpack.c.l.b16 %v863
    %v1522 = vunpack.c.h.b16 %v863
    %v1523 = vunpack.c.l.b16 %v864
    %v1524 = vunpack.c.h.b16 %v864
    %v1525 = vunpack.c.l.b16 %v865
    %v1526 = vunpack.c.h.b16 %v865
    %v1527 = vunpack.c.l.b16 %v866
    %v1528 = vunpack.c.h.b16 %v866
    %v1529 = vunpack.c.l.b16 %v867
    %v1530 = vunpack.c.h.b16 %v867
    %v1531 = vunpack.c.l.b16 %v868
    %v1532 = vunpack.c.h.b16 %v868
    %v1533 = vunpack.c.l.b16 %v869
    %v1534 = vunpack.c.h.b16 %v869
    %v1535 = vunpack.c.l.b16 %v870
    %v1536 = vunpack.c.h.b16 %v870
    %v1537 = vunpack.c.l.b16 %v871
    %v1538 = vunpack.c.h.b16 %v871
    %v1539 = vunpack.c.l.b16 %v872
    %v1540 = vunpack.c.h.b16 %v872
    %v1541 = vunpack.c.l.b16 %v873
    %v1542 = vunpack.c.h.b16 %v873
    %v1543 = vunpack.c.l.b16 %v874
    %v1544 = vunpack.c.h.b16 %v874
    %v1545 = vunpack.c.l.b16 %v875
    %v1546 = vunpack.c.h.b16 %v875
    %v1547 = vunpack.c.l.b16 %v876
    %v1548 = vunpack.c.h.b16 %v876
    %v1549 = vunpack.c.l.b16 %v877
    %v1550 = vunpack.c.h.b16 %v877
    %v1551 = vunpack.c.l.b16 %v878
    %v1552 = vunpack.c.h.b16 %v878
    %v1553 = vunpack.c.l.b16 %v879
    %v1554 = vunpack.c.h.b16 %v879
    %v1555 = vunpack.c.l.b16 %v880
    %v1556 = vunpack.c.h.b16 %v880
    %v1557 = vunpack.c.l.b16 %v881
    %v1558 = vunpack.c.h.b16 %v881
    %v1559 = vunpack.c.l.b16 %v882
    %v1560 = vunpack.c.h.b16 %v882
    %v1561 = vunpack.c.l.b16 %v883
    %v1562 = vunpack.c.h.b16 %v883
    %v1563 = vunpack.c.l.b16 %v884
    %v1564 = vunpack.c.h.b16 %v884
    %v1565 = vunpack.c.l.b16 %v885
    %v1566 = vunpack.c.h.b16 %v885
    %v1567 = vunpack.c.l.b16 %v886
    %v1568 = vunpack.c.h.b16 %v886
    %v1569 = vunpack.c.l.b16 %v887
    %v1570 = vunpack.c.h.b16 %v887
    %v1571 = vunpack.c.l.b16 %v888
    %v1572 = vunpack.c.h.b16 %v888
    %v1573 = vunpack.c.l.b16 %v889
    %v1574 = vunpack.c.h.b16 %v889
    %v1575 = vunpack.c.l.b16 %v890
    %v1576 = vunpack.c.h.b16 %v890
    %v1577 = vunpack.c.l.b16 %v891
    %v1578 = vunpack.c.h.b16 %v891
    %v1579 = vunpack.c.l.b16 %v892
    %v1580 = vunpack.c.h.b16 %v892
    %v1581 = vunpack.c.l.b16 %v893
    %v1582 = vunpack.c.h.b16 %v893
    %v1583 = vunpack.c.l.b16 %v894
    %v1584 = vunpack.c.h.b16 %v894
    %v1585 = vunpack.c.l.b16 %v895
    %v1586 = vunpack.c.h.b16 %v895
    %v1587 = vunpack.c.l.b16 %v896
    %v1588 = vunpack.c.h.b16 %v896
    %v1589 = vunpack.c.l.b16 %v897
    %v1590 = vunpack.c.h.b16 %v897
    %v1591 = vunpack.c.l.b16 %v898
    %v1592 = vunpack.c.h.b16 %v898
    %v1593 = vunpack.c.l.b16 %v899
    %v1594 = vunpack.c.h.b16 %v899
    %v1595 = vunpack.c.l.b16 %v900
    %v1596 = vunpack.c.h.b16 %v900
    %v1597 = vunpack.c.l.b16 %v901
    %v1598 = vunpack.c.h.b16 %v901
    %v1599 = vunpack.c.l.b16 %v902
    %v1600 = vunpack.c.h.b16 %v902
    %v1601 = vunpack.c.l.b16 %v903
    %v1602 = vunpack.c.h.b16 %v903
    %v1603 = vunpack.c.l.b16 %v904
    %v1604 = vunpack.c.h.b16 %v904
    %v1605 = vunpack.c.l.b16 %v905
    %v1606 = vunpack.c.h.b16 %v905
    %v1607 = vunpack.c.l.b16 %v906
    %v1608 = vunpack.c.h.b16 %v906
    %v1609 = vunpack.c.l.b16 %v907
    %v1610 = vunpack.c.h.b16 %v907
    %v1611 = vunpack.c.l.b16 %v908
    %v1612 = vunpack.c.h.b16 %v908
    %v1613 = vunpack.c.l.b16 %v909
    %v1614 = vunpack.c.h.b16 %v909
    %v1615 = vunpack.c.l.b16 %v910
    %v1616 = vunpack.c.h.b16 %v910
    %v1617 = vunpack.c.l.b16 %v911
    %v1618 = vunpack.c.h.b16 %v911
    %v1619 = vunpack.c.l.b16 %v912
    %v1620 = vunpack.c.h.b16 %v912
    %v1621 = vunpack.c.l.b16 %v913
    %v1622 = vunpack.c.h.b16 %v913
    %v1623 = vunpack.c.l.b16 %v914
    %v1624 = vunpack.c.h.b16 %v914
    %v1625 = vunpack.c.l.b16 %v915
    %v1626 = vunpack.c.h.b16 %v915
    %v1627 = vunpack.c.l.b16 %v916
    %v1628 = vunpack.c.h.b16 %v916
    %v1629 = vunpack.c.l.b16 %v917
    %v1630 = vunpack.c.h.b16 %v917
    %v1631 = vunpack.c.l.b16 %v918
    %v1632 = vunpack.c.h.b16 %v918
    %v1633 = vunpack.c.l.b16 %v919
    %v1634 = vunpack.c.h.b16 %v919
    %v1635 = vunpack.c.l.b16 %v920
    %v1636 = vunpack.c.h.b16 %v920
    %v1637 = vunpack.c.l.b16 %v921
    %v1638 = vunpack.c.h.b16 %v921
    %v1639 = vunpack.c.l.b16 %v922
    %v1640 = vunpack.c.h.b16 %v922
    %v1641 = vunpack.c.l.b16 %v923
    %v1642 = vunpack.c.h.b16 %v923
    %v1643 = vunpack.c.l.b16 %v924
    %v1644 = vunpack.c.h.b16 %v924
    %v1645 = vunpack.c.l.b16 %v925
    %v1646 = vunpack.c.h.b16 %v925
    %v1647 = vunpack.c.l.b16 %v926
    %v1648 = vunpack.c.h.b16 %v926
    %v1649 = vunpack.c.l.b16 %v927
    %v1650 = vunpack.c.h.b16 %v927
    %v1651 = vunpack.c.l.b16 %v928
    %v1652 = vunpack.c.h.b16 %v928
    %v1653 = vunpack.c.l.b16 %v929
    %v1654 = vunpack.c.h.b16 %v929
    %v1655 = vunpack.c.l.b16 %v930
    %v1656 = vunpack.c.h.b16 %v930
    %v1657 = vunpack.c.l.b16 %v931
    %v1658 = vunpack.c.h.b16 %v931
    %v1659 = vunpack.c.l.b16 %v932
    %v1660 = vunpack.c.h.b16 %v932
    %v1661 = vunpack.c.l.b16 %v933
    %v1662 = vunpack.c.h.b16 %v933
    %v1663 = vunpack.c.l.b16 %v934
    %v1664 = vunpack.c.h.b16 %v934
    %v1665 = vunpack.c.l.b16 %v935
    %v1666 = vunpack.c.h.b16 %v935
    %v1667 = vunpack.c.l.b16 %v936
    %v1668 = vunpack.c.h.b16 %v936
    %v1669 = vunpack.c.l.b16 %v937
    %v1670 = vunpack.c.h.b16 %v937
    %v1671 = vunpack.c.l.b16 %v938
    %v1672 = vunpack.c.h.b16 %v938
    %v1673 = vunpack.c.l.b16 %v939
    %v1674 = vunpack.c.h.b16 %v939
    %v1675 = vunpack.c.l.b16 %v940
    %v1676 = vunpack.c.h.b16 %v940
    %v1677 = vunpack.c.l.b16 %v941
    %v1678 = vunpack.c.h.b16 %v941
    %v1679 = vunpack.c.l.b16 %v942
    %v1680 = vunpack.c.h.b16 %v942
    %v1681 = vunpack.c.l.b16 %v943
    %v1682 = vunpack.c.h.b16 %v943
    %v1683 = vunpack.c.l.b16 %v944
    %v1684 = vunpack.c.h.b16 %v944
    %v1685 = vunpack.c.l.b16 %v945
    %v1686 = vunpack.c.h.b16 %v945
    %v1687 = vunpack.c.l.b16 %v946
    %v1688 = vunpack.c.h.b16 %v946
    %v1689 = vunpack.c.l.b16 %v947
    %v1690 = vunpack.c.h.b16 %v947
    %v1691 = vunpack.c.l.b16 %v948
    %v1692 = vunpack.c.h.b16 %v948
    %v1693 = vunpack.c.l.b16 %v949
    %v1694 = vunpack.c.h.b16 %v949
    %v1695 = vunpack.c.l.b16 %v950
    %v1696 = vunpack.c.h.b16 %v950
    %v1697 = vunpack.c.l.b16 %v951
    %v1698 = vunpack.c.h.b16 %v951
    %v1699 = vunpack.c.l.b16 %v952
    %v1700 = vunpack.c.h.b16 %v952
    %v1701 = vunpack.c.l.b16 %v953
    %v1702 = vunpack.c.h.b16 %v953
    %v1703 = vunpack.c.l.b16 %v954
    %v1704 = vunpack.c.h.b16 %v954
    %v1705 = vunpack.c.l.b16 %v955
    %v1706 = vunpack.c.h.b16 %v955
    %v1707 = vunpack.c.l.b16 %v956
    %v1708 = vunpack.c.h.b16 %v956
    %v1709 = vunpack.c.l.b16 %v957
    %v1710 = vunpack.c.h.b16 %v957
    %v1711 = vunpack.c.l.b16 %v958
    %v1712 = vunpack.c.h.b16 %v958
    %v1713 = vunpack.c.l.b16 %v959
    %v1714 = vunpack.c.h.b16 %v959
    %v1715 = vunpack.c.l.b16 %v960
    %v1716 = vunpack.c.h.b16 %v960
    %v1717 = vunpack.c.l.b16 %v961
    %v1718 = vunpack.c.h.b16 %v961
    %v1719 = vunpack.c.l.b16 %v962
    %v1720 = vunpack.c.h.b16 %v962
    %v1721 = vunpack.c.l.b16 %v963
    %v1722 = vunpack.c.h.b16 %v963
    %v1723 = vunpack.c.l.b16 %v964
    %v1724 = vunpack.c.h.b16 %v964
    %v1725 = vunpack.c.l.b16 %v965
    %v1726 = vunpack.c.h.b16 %v965
    %v1727 = vunpack.c.l.b16 %v966
    %v1728 = vunpack.c.h.b16 %v966
    %v1729 = vunpack.c.l.b16 %v967
    %v1730 = vunpack.c.h.b16 %v967
    %v1731 = vunpack.c.l.b16 %v968
    %v1732 = vunpack.c.h.b16 %v968
    %v1733 = vunpack.c.l.b16 %v969
    %v1734 = vunpack.c.h.b16 %v969
    %v1735 = vunpack.c.l.b16 %v970
    %v1736 = vunpack.c.h.b16 %v970
    %v1737 = vunpack.c.l.b16 %v971
    %v1738 = vunpack.c.h.b16 %v971
    %v1739 = vunpack.c.l.b16 %v972
    %v1740 = vunpack.c.h.b16 %v972
    %v1741 = vunpack.c.l.b16 %v973
    %v1742 = vunpack.c.h.b16 %v973
    %v1743 = vunpack.c.l.b16 %v974
    %v1744 = vunpack.c.h.b16 %v974
    %v1745 = vunpack.c.l.b16 %v975
    %v1746 = vunpack.c.h.b16 %v975
    %v1747 = vunpack.c.l.b16 %v976
    %v1748 = vunpack.c.h.b16 %v976
    %v1749 = vunpack.c.l.b16 %v977
    %v1750 = vunpack.c.h.b16 %v977
    %v1751 = vunpack.c.l.b16 %v978
    %v1752 = vunpack.c.h.b16 %v978
    %v1753 = vunpack.c.l.b16 %v979
    %v1754 = vunpack.c.h.b16 %v979
    %v1755 = vunpack.c.l.b16 %v980
    %v1756 = vunpack.c.h.b16 %v980
    %v1757 = vunpack.c.l.b16 %v981
    %v1758 = vunpack.c.h.b16 %v981
    %v1759 = vunpack.c.l.b16 %v982
    %v1760 = vunpack.c.h.b16 %v982
    %v1761 = vunpack.c.l.b16 %v983
    %v1762 = vunpack.c.h.b16 %v983
    %v1763 = vunpack.c.l.b16 %v984
    %v1764 = vunpack.c.h.b16 %v984
    %v1765 = vunpack.c.l.b16 %v985
    %v1766 = vunpack.c.h.b16 %v985
    %v1767 = vunpack.c.l.b16 %v986
    %v1768 = vunpack.c.h.b16 %v986
    %v1769 = vunpack.c.l.b16 %v987
    %v1770 = vunpack.c.h.b16 %v987
    %v1771 = vunpack.c.l.b16 %v988
    %v1772 = vunpack.c.h.b16 %v988
    %v1773 = vunpack.c.l.b16 %v989
    %v1774 = vunpack.c.h.b16 %v989
    %v1775 = vunpack.c.l.b16 %v990
    %v1776 = vunpack.c.h.b16 %v990
    %v1777 = vunpack.c.l.b16 %v991
    %v1778 = vunpack.c.h.b16 %v991
    %v1779 = vunpack.c.l.b16 %v992
    %v1780 = vunpack.c.h.b16 %v992
    %v1781 = vunpack.c.l.b16 %v993
    %v1782 = vunpack.c.h.b16 %v993
    %v1783 = vunpack.c.l.b16 %v994
    %v1784 = vunpack.c.h.b16 %v994
    %v1785 = vpack.c.b16 %v1277, %v1273
    %v1786 = vpack.c.b16 %v1278, %v1274
    %v1787 = vpack.c.b16 %v1279, %v1275
    %v1788 = vpack.c.b16 %v1280, %v1276
    %v1789 = vpack.c.b16 %v1285, %v1281
    %v1790 = vpack.c.b16 %v1286, %v1282
    %v1791 = vpack.c.b16 %v1287, %v1283
    %v1792 = vpack.c.b16 %v1288, %v1284
    %v1793 = vpack.c.b16 %v1293, %v1289
    %v1794 = vpack.c.b16 %v1294, %v1290
    %v1795 = vpack.c.b16 %v1295, %v1291
    %v1796 = vpack.c.b16 %v1296, %v1292
    %v1797 = vpack.c.b16 %v1301, %v1297
    %v1798 = vpack.c.b16 %v1302, %v1298
    %v1799 = vpack.c.b16 %v1303, %v1299
    %v1800 = vpack.c.b16 %v1304, %v1300
    %v1801 = vpack.c.b16 %v1309, %v1305
    %v1802 = vpack.c.b16 %v1310, %v1306
    %v1803 = vpack.c.b16 %v1311, %v1307
    %v1804 = vpack.c.b16 %v1312, %v1308
    %v1805 = vpack.c.b16 %v1317, %v1313
    %v1806 = vpack.c.b16 %v1318, %v1314
    %v1807 = vpack.c.b16 %v1319, %v1315
    %v1808 = vpack.c.b16 %v1320, %v1316
    %v1809 = vpack.c.b16 %v1325, %v1321
    %v1810 = vpack.c.b16 %v1326, %v1322
    %v1811 = vpack.c.b16 %v1327, %v1323
    %v1812 = vpack.c.b16 %v1328, %v1324
    %v1813 = vpack.c.b16 %v1333, %v1329
    %v1814 = vpack.c.b16 %v1334, %v1330
    %v1815 = vpack.c.b16 %v1335, %v1331
    %v1816 = vpack.c.b16 %v1336, %v1332
    %v1817 = vpack.c.b16 %v1341, %v1337
    %v1818 = vpack.c.b16 %v1342, %v1338
    %v1819 = vpack.c.b16 %v1343, %v1339
    %v1820 = vpack.c.b16 %v1344, %v1340
    %v1821 = vpack.c.b16 %v1349, %v1345
    %v1822 = vpack.c.b16 %v1350, %v1346
    %v1823 = vpack.c.b16 %v1351, %v1347
    %v1824 = vpack.c.b16 %v1352, %v1348
    %v1825 = vpack.c.b16 %v1357, %v1353
    %v1826 = vpack.c.b16 %v1358, %v1354
    %v1827 = vpack.c.b16 %v1359, %v1355
    %v1828 = vpack.c.b16 %v1360, %v1356
    %v1829 = vpack.c.b16 %v1365, %v1361
    %v1830 = vpack.c.b16 %v1366, %v1362
    %v1831 = vpack.c.b16 %v1367, %v1363
    %v1832 = vpack.c.b16 %v1368, %v1364
    %v1833 = vpack.c.b16 %v1373, %v1369
    %v1834 = vpack.c.b16 %v1374, %v1370
    %v1835 = vpack.c.b16 %v1375, %v1371
    %v1836 = vpack.c.b16 %v1376, %v1372
    %v1837 = vpack.c.b16 %v1381, %v1377
    %v1838 = vpack.c.b16 %v1382, %v1378
    %v1839 = vpack.c.b16 %v1383, %v1379
    %v1840 = vpack.c.b16 %v1384, %v1380
    %v1841 = vpack.c.b16 %v1389, %v1385
    %v1842 = vpack.c.b16 %v1390, %v1386
    %v1843 = vpack.c.b16 %v1391, %v1387
    %v1844 = vpack.c.b16 %v1392, %v1388
    %v1845 = vpack.c.b16 %v1397, %v1393
    %v1846 = vpack.c.b16 %v1398, %v1394
    %v1847 = vpack.c.b16 %v1399, %v1395
    %v1848 = vpack.c.b16 %v1400, %v1396
    %v1849 = vpack.c.b16 %v1405, %v1401
    %v1850 = vpack.c.b16 %v1406, %v1402
    %v1851 = vpack.c.b16 %v1407, %v1403
    %v1852 = vpack.c.b16 %v1408, %v1404
    %v1853 = vpack.c.b16 %v1413, %v1409
    %v1854 = vpack.c.b16 %v1414, %v1410
    %v1855 = vpack.c.b16 %v1415, %v1411
    %v1856 = vpack.c.b16 %v1416, %v1412
    %v1857 = vpack.c.b16 %v1421, %v1417
    %v1858 = vpack.c.b16 %v1422, %v1418
    %v1859 = vpack.c.b16 %v1423, %v1419
    %v1860 = vpack.c.b16 %v1424, %v1420
    %v1861 = vpack.c.b16 %v1429, %v1425
    %v1862 = vpack.c.b16 %v1430, %v1426
    %v1863 = vpack.c.b16 %v1431, %v1427
    %v1864 = vpack.c.b16 %v1432, %v1428
    %v1865 = vpack.c.b16 %v1437, %v1433
    %v1866 = vpack.c.b16 %v1438, %v1434
    %v1867 = vpack.c.b16 %v1439, %v1435
    %v1868 = vpack.c.b16 %v1440, %v1436
    %v1869 = vpack.c.b16 %v1445, %v1441
    %v1870 = vpack.c.b16 %v1446, %v1442
    %v1871 = vpack.c.b16 %v1447, %v1443
    %v1872 = vpack.c.b16 %v1448, %v1444
    %v1873 = vpack.c.b16 %v1453, %v1449
    %v1874 = vpack.c.b16 %v1454, %v1450
    %v1875 = vpack.c.b16 %v1455, %v1451
    %v1876 = vpack.c.b16 %v1456, %v1452
    %v1877 = vpack.c.b16 %v1461, %v1457
    %v1878 = vpack.c.b16 %v1462, %v1458
    %v1879 = vpack.c.b16 %v1463, %v1459
    %v1880 = vpack.c.b16 %v1464, %v1460
    %v1881 = vpack.c.b16 %v1469, %v1465
    %v1882 = vpack.c.b16 %v1470, %v1466
    %v1883 = vpack.c.b16 %v1471, %v1467
    %v1884 = vpack.c.b16 %v1472, %v1468
    %v1885 = vpack.c.b16 %v1477, %v1473
    %v1886 = vpack.c.b16 %v1478, %v1474
    %v1887 = vpack.c.b16 %v1479, %v1475
    %v1888 = vpack.c.b16 %v1480, %v1476
    %v1889 = vpack.c.b16 %v1485, %v1481
    %v1890 = vpack.c.b16 %v1486, %v1482
    %v1891 = vpack.c.b16 %v1487, %v1483
    %v1892 = vpack.c.b16 %v1488, %v1484
    %v1893 = vpack.c.b16 %v1493, %v1489
    %v1894 = vpack.c.b16 %v1494, %v1490
    %v1895 = vpack.c.b16 %v1495, %v1491
    %v1896 = vpack.c.b16 %v1496, %v1492
    %v1897 = vpack.c.b16 %v1501, %v1497
    %v1898 = vpack.c.b16 %v1502, %v1498
    %v1899 = vpack.c.b16 %v1503, %v1499
    %v1900 = vpack.c.b16 %v1504, %v1500
    %v1901 = vpack.c.b16 %v1509, %v1505
    %v1902 = vpack.c.b16 %v1510, %v1506
    %v1903 = vpack.c.b16 %v1511, %v1507
    %v1904 = vpack.c.b16 %v1512, %v1508
    %v1905 = vpack.c.b16 %v1517, %v1513
    %v1906 = vpack.c.b16 %v1518, %v1514
    %v1907 = vpack.c.b16 %v1519, %v1515
    %v1908 = vpack.c.b16 %v1520, %v1516
    %v1909 = vpack.c.b16 %v1525, %v1521
    %v1910 = vpack.c.b16 %v1526, %v1522
    %v1911 = vpack.c.b16 %v1527, %v1523
    %v1912 = vpack.c.b16 %v1528, %v1524
    %v1913 = vpack.c.b16 %v1533, %v1529
    %v1914 = vpack.c.b16 %v1534, %v1530
    %v1915 = vpack.c.b16 %v1535, %v1531
    %v1916 = vpack.c.b16 %v1536, %v1532
    %v1917 = vpack.c.b16 %v1541, %v1537
    %v1918 = vpack.c.b16 %v1542, %v1538
    %v1919 = vpack.c.b16 %v1543, %v1539
    %v1920 = vpack.c.b16 %v1544, %v1540
    %v1921 = vpack.c.b16 %v1549, %v1545
    %v1922 = vpack.c.b16 %v1550, %v1546
    %v1923 = vpack.c.b16 %v1551, %v1547
    %v1924 = vpack.c.b16 %v1552, %v1548
    %v1925 = vpack.c.b16 %v1557, %v1553
    %v1926 = vpack.c.b16 %v1558, %v1554
    %v1927 = vpack.c.b16 %v1559, %v1555
    %v1928 = vpack.c.b16 %v1560, %v1556
    %v1929 = vpack.c.b16 %v1565, %v1561
    %v1930 = vpack.c.b16 %v1566, %v1562
    %v1931 = vpack.c.b16 %v1567, %v1563
    %v1932 = vpack.c.b16 %v1568, %v1564
    %v1933 = vpack.c.b16 %v1573, %v1569
    %v1934 = vpack.c.b16 %v1574, %v1570
    %v1935 = vpack.c.b16 %v1575, %v1571
    %v1936 = vpack.c.b16 %v1576, %v1572
    %v1937 = vpack.c.b16 %v1581, %v1577
    %v1938 = vpack.c.b16 %v1582, %v1578
    %v1939 = vpack.c.b16 %v1583, %v1579
    %v1940 = vpack.c.b16 %v1584, %v1580
    %v1941 = vpack.c.b16 %v1589, %v1585
    %v1942 = vpack.c.b16 %v1590, %v1586
    %v1943 = vpack.c.b16 %v1591, %v1587
    %v1944 = vpack.c.b16 %v1592, %v1588
    %v1945 = vpack.c.b16 %v1597, %v1593
    %v1946 = vpack.c.b16 %v1598, %v1594
    %v1947 = vpack.c.b16 %v1599, %v1595
    %v1948 = vpack.c.b16 %v1600, %v1596
    %v1949 = vpack.c.b16 %v1605, %v1601
    %v1950 = vpack.c.b16 %v1606, %v1602
    %v1951 = vpack.c.b16 %v1607, %v1603
    %v1952 = vpack.c.b16 %v1608, %v1604
    %v1953 = vpack.c.b16 %v1613, %v1609
    %v1954 = vpack.c.b16 %v1614, %v1610
    %v1955 = vpack.c.b16 %v1615, %v1611
    %v1956 = vpack.c.b16 %v1616, %v1612
    %v1957 = vpack.c.b16 %v1621, %v1617
    %v1958 = vpack.c.b16 %v1622, %v1618
    %v1959 = vpack.c.b16 %v1623, %v1619
    %v1960 = vpack.c.b16 %v1624, %v1620
    %v1961 = vpack.c.b16 %v1629, %v1625
    %v1962 = vpack.c.b16 %v1630, %v1626
    %v1963 = vpack.c.b16 %v1631, %v1627
    %v1964 = vpack.c.b16 %v1632, %v1628
    %v1965 = vpack.c.b16 %v1637, %v1633
    %v1966 = vpack.c.b16 %v1638, %v1634
    %v1967 = vpack.c.b16 %v1639, %v1635
    %v1968 = vpack.c.b16 %v1640, %v1636
    %v1969 = vpack.c.b16 %v1645, %v1641
    %v1970 = vpack.c.b16 %v1646, %v1642
    %v1971 = vpack.c.b16 %v1647, %v1643
    %v1972 = vpack.c.b16 %v1648, %v1644
    %v1973 = vpack.c.b16 %v1653, %v1649
    %v1974 = vpack.c.b16 %v1654, %v1650
    %v1975 = vpack.c.b16 %v1655, %v1651
    %v1976 = vpack.c.b16 %v1656, %v1652
    %v1977 = vpack.c.b16 %v1661, %v1657
    %v1978 = vpack.c.b16 %v1662, %v1658
    %v1979 = vpack.c.b16 %v1663, %v1659
    %v1980 = vpack.c.b16 %v1664, %v1660
    %v1981 = vpack.c.b16 %v1669, %v1665
    %v1982 = vpack.c.b16 %v1670, %v1666
    %v1983 = vpack.c.b16 %v1671, %v1667
    %v1984 = vpack.c.b16 %v1672, %v1668
    %v1985 = vpack.c.b16 %v1677, %v1673
    %v1986 = vpack.c.b16 %v1678, %v1674
    %v1987 = vpack.c.b16 %v1679, %v1675
    %v1988 = vpack.c.b16 %v1680, %v1676
    %v1989 = vpack.c.b16 %v1685, %v1681
    %v1990 = vpack.c.b16 %v1686, %v1682
    %v1991 = vpack.c.b16 %v1687, %v1683
    %v1992 = vpack.c.b16 %v1688, %v1684
    %v1993 = vpack.c.b16 %v1693, %v1689
    %v1994 = vpack.c.b16 %v1694, %v1690
    %v1995 = vpack.c.b16 %v1695, %v1691
    %v1996 = vpack.c.b16 %v1696, %v1692
    %v1997 = vpack.c.b16 %v1701, %v1697
    %v1998 = vpack.c.b16 %v1702, %v1698
    %v1999 = vpack.c.b16 %v1703, %v1699
    %v2000 = vpack.c.b16 %v1704, %v1700
    %v2001 = vpack.c.b16 %v1709, %v1705
    %v2002 = vpack.c.b16 %v1710, %v1706
    %v2003 = vpack.c.b16 %v1711, %v1707
    %v2004 = vpack.c.b16 %v1712, %v1708
    %v2005 = vpack.c.b16 %v1717, %v1713
    %v2006 = vpack.c.b16 %v1718, %v1714
    %v2007 = vpack.c.b16 %v1719, %v1715
    %v2008 = vpack.c.b16 %v1720, %v1716
    %v2009 = vpack.c.b16 %v1725, %v1721
    %v2010 = vpack.c.b16 %v1726, %v1722
    %v2011 = vpack.c.b16 %v1727, %v1723
    %v2012 = vpack.c.b16 %v1728, %v1724
    %v2013 = vpack.c.b16 %v1733, %v1729
    %v2014 = vpack.c.b16 %v1734, %v1730
    %v2015 = vpack.c.b16 %v1735, %v1731
    %v2016 = vpack.c.b16 %v1736, %v1732
    %v2017 = vpack.c.b16 %v1741, %v1737
    %v2018 = vpack.c.b16 %v1742, %v1738
    %v2019 = vpack.c.b16 %v1743, %v1739
    %v2020 = vpack.c.b16 %v1744, %v1740
    %v2021 = vpack.c.b16 %v1749, %v1745
    %v2022 = vpack.c.b16 %v1750, %v1746
    %v2023 = vpack.c.b16 %v1751, %v1747
    %v2024 = vpack.c.b16 %v1752, %v1748
    %v2025 = vpack.c.b16 %v1757, %v1753
    %v2026 = vpack.c.b16 %v1758, %v1754
    %v2027 = vpack.c.b16 %v1759, %v1755
    %v2028 = vpack.c.b16 %v1760, %v1756
    %v2029 = vpack.c.b16 %v1765, %v1761
    %v2030 = vpack.c.b16 %v1766, %v1762
    %v2031 = vpack.c.b16 %v1767, %v1763
    %v2032 = vpack.c.b16 %v1768, %v1764
    %v2033 = vpack.c.b16 %v1773, %v1769
    %v2034 = vpack.c.b16 %v1774, %v1770
    %v2035 = vpack.c.b16 %v1775, %v1771
    %v2036 = vpack.c.b16 %v1776, %v1772
    %v2037 = vpack.c.b16 %v1781, %v1777
    %v2038 = vpack.c.b16 %v1782, %v1778
    %v2039 = vpack.c.b16 %v1783, %v1779
    %v2040 = vpack.c.b16 %v1784, %v1780
    %2297 = vmatprep.subr.bf16.mxu0 %v1786
    %2298 = vmatpush1.bf16.msra.mxu0 %v1785
    %2299 = vmatprep.subr.bf16.mxu0 %v1790
    %2300 = vmatpush1.bf16.msra.mxu0 %v1789
    %2301 = vmatprep.subr.bf16.mxu0 %v1794
    %2302 = vmatpush1.bf16.msra.mxu0 %v1793
    %2303 = vmatprep.subr.bf16.mxu0 %v1798
    %2304 = vmatpush1.bf16.msra.mxu0 %v1797
    %2305 = vmatprep.subr.bf16.mxu0 %v1802
    %2306 = vmatpush1.bf16.msra.mxu0 %v1801
    %2307 = vmatprep.subr.bf16.mxu0 %v1806
    %2308 = vmatpush1.bf16.msra.mxu0 %v1805
    %2309 = vmatprep.subr.bf16.mxu0 %v1810
    %2310 = vmatpush1.bf16.msra.mxu0 %v1809
    %2311 = vmatprep.subr.bf16.mxu0 %v1814
    %2312 = vmatpush1.bf16.msra.mxu0 %v1813
    %2313 = vmatprep.subr.bf16.mxu0 %v1818
    %2314 = vmatpush1.bf16.msra.mxu0 %v1817
    %2315 = vmatprep.subr.bf16.mxu0 %v1822
    %2316 = vmatpush1.bf16.msra.mxu0 %v1821
    %2317 = vmatprep.subr.bf16.mxu0 %v1826
    %2318 = vmatpush1.bf16.msra.mxu0 %v1825
    %2319 = vmatprep.subr.bf16.mxu0 %v1830
    %2320 = vmatpush1.bf16.msra.mxu0 %v1829
    %2321 = vmatprep.subr.bf16.mxu0 %v1834
    %2322 = vmatpush1.bf16.msra.mxu0 %v1833
    %2323 = vmatprep.subr.bf16.mxu0 %v1838
    %2324 = vmatpush1.bf16.msra.mxu0 %v1837
    %2325 = vmatprep.subr.bf16.mxu0 %v1842
    %2326 = vmatpush1.bf16.msra.mxu0 %v1841
    %2327 = vmatprep.subr.bf16.mxu0 %v1846
    %2328 = vmatpush1.bf16.msra.mxu0 %v1845
    %2329 = vmatprep.mubr.bf16.mxu0 %v732
    %2330 = vmatmul.mubr.bf16.gmra.mrb[0].mxu0 %v731
    %v2331 = vpop.f32.mrb[0].mxu0
    %v2332 = vadd.f32 %v1000, %v2331
    %v2333 = vpop.f32.mrb[0].mxu0
    %v2334 = vadd.f32 %v1004, %v2333
    %v2335 = vpop.f32.mrb[0].mxu0
    %v2336 = vpop.f32.mrb[0].mxu0
    %2337 = vdwg.mxu0
    %2338 = vmatprep.subr.bf16.mxu0 %v1850
    %2339 = vmatpush1.bf16.msra.mxu0 %v1849
    %2340 = vmatprep.subr.bf16.mxu0 %v1854
    %2341 = vmatpush1.bf16.msra.mxu0 %v1853
    %2342 = vmatprep.subr.bf16.mxu0 %v1858
    %2343 = vmatpush1.bf16.msra.mxu0 %v1857
    %2344 = vmatprep.subr.bf16.mxu0 %v1862
    %2345 = vmatpush1.bf16.msra.mxu0 %v1861
    %2346 = vmatprep.subr.bf16.mxu0 %v1866
    %2347 = vmatpush1.bf16.msra.mxu0 %v1865
    %2348 = vmatprep.subr.bf16.mxu0 %v1870
    %2349 = vmatpush1.bf16.msra.mxu0 %v1869
    %2350 = vmatprep.subr.bf16.mxu0 %v1874
    %2351 = vmatpush1.bf16.msra.mxu0 %v1873
    %2352 = vmatprep.subr.bf16.mxu0 %v1878
    %2353 = vmatpush1.bf16.msra.mxu0 %v1877
    %2354 = vmatprep.subr.bf16.mxu0 %v1882
    %2355 = vmatpush1.bf16.msra.mxu0 %v1881
    %2356 = vmatprep.subr.bf16.mxu0 %v1886
    %2357 = vmatpush1.bf16.msra.mxu0 %v1885
    %2358 = vmatprep.subr.bf16.mxu0 %v1890
    %2359 = vmatpush1.bf16.msra.mxu0 %v1889
    %2360 = vmatprep.subr.bf16.mxu0 %v1894
    %2361 = vmatpush1.bf16.msra.mxu0 %v1893
    %2362 = vmatprep.subr.bf16.mxu0 %v1898
    %2363 = vmatpush1.bf16.msra.mxu0 %v1897
    %2364 = vmatprep.subr.bf16.mxu0 %v1902
    %2365 = vmatpush1.bf16.msra.mxu0 %v1901
    %2366 = vmatprep.subr.bf16.mxu0 %v1906
    %2367 = vmatpush1.bf16.msra.mxu0 %v1905
    %2368 = vmatprep.subr.bf16.mxu0 %v1910
    %2369 = vmatpush1.bf16.msra.mxu0 %v1909
    %2370 = vmatprep.mubr.bf16.mxu0 %v734
    %2371 = vmatmul.mubr.bf16.gmra.mrb[0].mxu0 %v733
    %v2372 = vpop.f32.mrb[0].mxu0
    %v2373 = vadd.f32 %v2332, %v2372
    %v2374 = vpop.f32.mrb[0].mxu0
    %v2375 = vadd.f32 %v2334, %v2374
    %v2376 = vpop.f32.mrb[0].mxu0
    %v2377 = vpop.f32.mrb[0].mxu0
    %2378 = vdwg.mxu0
    %2379 = vmatprep.subr.bf16.mxu0 %v1914
    %2380 = vmatpush1.bf16.msra.mxu0 %v1913
    %2381 = vmatprep.subr.bf16.mxu0 %v1918
    %2382 = vmatpush1.bf16.msra.mxu0 %v1917
    %2383 = vmatprep.subr.bf16.mxu0 %v1922
    %2384 = vmatpush1.bf16.msra.mxu0 %v1921
    %2385 = vmatprep.subr.bf16.mxu0 %v1926
    %2386 = vmatpush1.bf16.msra.mxu0 %v1925
    %2387 = vmatprep.subr.bf16.mxu0 %v1930
    %2388 = vmatpush1.bf16.msra.mxu0 %v1929
    %2389 = vmatprep.subr.bf16.mxu0 %v1934
    %2390 = vmatpush1.bf16.msra.mxu0 %v1933
    %2391 = vmatprep.subr.bf16.mxu0 %v1938
    %2392 = vmatpush1.bf16.msra.mxu0 %v1937
    %2393 = vmatprep.subr.bf16.mxu0 %v1942
    %2394 = vmatpush1.bf16.msra.mxu0 %v1941
    %2395 = vmatprep.subr.bf16.mxu0 %v1946
    %2396 = vmatpush1.bf16.msra.mxu0 %v1945
    %2397 = vmatprep.subr.bf16.mxu0 %v1950
    %2398 = vmatpush1.bf16.msra.mxu0 %v1949
    %2399 = vmatprep.subr.bf16.mxu0 %v1954
    %2400 = vmatpush1.bf16.msra.mxu0 %v1953
    %2401 = vmatprep.subr.bf16.mxu0 %v1958
    %2402 = vmatpush1.bf16.msra.mxu0 %v1957
    %2403 = vmatprep.subr.bf16.mxu0 %v1962
    %2404 = vmatpush1.bf16.msra.mxu0 %v1961
    %2405 = vmatprep.subr.bf16.mxu0 %v1966
    %2406 = vmatpush1.bf16.msra.mxu0 %v1965
    %2407 = vmatprep.subr.bf16.mxu0 %v1970
    %2408 = vmatpush1.bf16.msra.mxu0 %v1969
    %2409 = vmatprep.subr.bf16.mxu0 %v1974
    %2410 = vmatpush1.bf16.msra.mxu0 %v1973
    %2411 = vmatprep.mubr.bf16.mxu0 %v736
    %2412 = vmatmul.mubr.bf16.gmra.mrb[0].mxu0 %v735
    %v2413 = vpop.f32.mrb[0].mxu0
    %v2414 = vadd.f32 %v2373, %v2413
    %v2415 = vpop.f32.mrb[0].mxu0
    %v2416 = vadd.f32 %v2375, %v2415
    %v2417 = vpop.f32.mrb[0].mxu0
    %v2418 = vpop.f32.mrb[0].mxu0
    %2419 = vdwg.mxu0
    %2420 = vmatprep.subr.bf16.mxu0 %v1978
    %2421 = vmatpush1.bf16.msra.mxu0 %v1977
    %2422 = vmatprep.subr.bf16.mxu0 %v1982
    %2423 = vmatpush1.bf16.msra.mxu0 %v1981
    %2424 = vmatprep.subr.bf16.mxu0 %v1986
    %2425 = vmatpush1.bf16.msra.mxu0 %v1985
    %2426 = vmatprep.subr.bf16.mxu0 %v1990
    %2427 = vmatpush1.bf16.msra.mxu0 %v1989
    %2428 = vmatprep.subr.bf16.mxu0 %v1994
    %2429 = vmatpush1.bf16.msra.mxu0 %v1993
    %2430 = vmatprep.subr.bf16.mxu0 %v1998
    %2431 = vmatpush1.bf16.msra.mxu0 %v1997
    %2432 = vmatprep.subr.bf16.mxu0 %v2002
    %2433 = vmatpush1.bf16.msra.mxu0 %v2001
    %2434 = vmatprep.subr.bf16.mxu0 %v2006
    %2435 = vmatpush1.bf16.msra.mxu0 %v2005
    %2436 = vmatprep.subr.bf16.mxu0 %v2010
    %2437 = vmatpush1.bf16.msra.mxu0 %v2009
    %2438 = vmatprep.subr.bf16.mxu0 %v2014
    %2439 = vmatpush1.bf16.msra.mxu0 %v2013
    %2440 = vmatprep.subr.bf16.mxu0 %v2018
    %2441 = vmatpush1.bf16.msra.mxu0 %v2017
    %2442 = vmatprep.subr.bf16.mxu0 %v2022
    %2443 = vmatpush1.bf16.msra.mxu0 %v2021
    %2444 = vmatprep.subr.bf16.mxu0 %v2026
    %2445 = vmatpush1.bf16.msra.mxu0 %v2025
    %2446 = vmatprep.subr.bf16.mxu0 %v2030
    %2447 = vmatpush1.bf16.msra.mxu0 %v2029
    %2448 = vmatprep.subr.bf16.mxu0 %v2034
    %2449 = vmatpush1.bf16.msra.mxu0 %v2033
    %2450 = vmatprep.subr.bf16.mxu0 %v2038
    %2451 = vmatpush1.bf16.msra.mxu0 %v2037
    %2452 = vmatprep.mubr.bf16.mxu0 %v738
    %2453 = vmatmul.mubr.bf16.gmra.mrb[0].mxu0 %v737
    %v2454 = vpop.f32.mrb[0].mxu0
    %v2455 = vadd.f32 %v2414, %v2454
    %v2456 = vpop.f32.mrb[0].mxu0
    %v2457 = vadd.f32 %v2416, %v2456
    %v2458 = vpop.f32.mrb[0].mxu0
    %v2459 = vpop.f32.mrb[0].mxu0
    %2460 = vdwg.mxu0
    %2461 = vmatprep.subr.bf16.mxu0 %v1788
    %2462 = vmatpush1.bf16.msra.mxu0 %v1787
    %2463 = vmatprep.subr.bf16.mxu0 %v1792
    %2464 = vmatpush1.bf16.msra.mxu0 %v1791
    %2465 = vmatprep.subr.bf16.mxu0 %v1796
    %2466 = vmatpush1.bf16.msra.mxu0 %v1795
    %2467 = vmatprep.subr.bf16.mxu0 %v1800
    %2468 = vmatpush1.bf16.msra.mxu0 %v1799
    %2469 = vmatprep.subr.bf16.mxu0 %v1804
    %2470 = vmatpush1.bf16.msra.mxu0 %v1803
    %2471 = vmatprep.subr.bf16.mxu0 %v1808
    %2472 = vmatpush1.bf16.msra.mxu0 %v1807
    %2473 = vmatprep.subr.bf16.mxu0 %v1812
    %2474 = vmatpush1.bf16.msra.mxu0 %v1811
    %2475 = vmatprep.subr.bf16.mxu0 %v1816
    %2476 = vmatpush1.bf16.msra.mxu0 %v1815
    %2477 = vmatprep.subr.bf16.mxu0 %v1820
    %2478 = vmatpush1.bf16.msra.mxu0 %v1819
    %2479 = vmatprep.subr.bf16.mxu0 %v1824
    %2480 = vmatpush1.bf16.msra.mxu0 %v1823
    %2481 = vmatprep.subr.bf16.mxu0 %v1828
    %2482 = vmatpush1.bf16.msra.mxu0 %v1827
    %2483 = vmatprep.subr.bf16.mxu0 %v1832
    %2484 = vmatpush1.bf16.msra.mxu0 %v1831
    %2485 = vmatprep.subr.bf16.mxu0 %v1836
    %2486 = vmatpush1.bf16.msra.mxu0 %v1835
    %2487 = vmatprep.subr.bf16.mxu0 %v1840
    %2488 = vmatpush1.bf16.msra.mxu0 %v1839
    %2489 = vmatprep.subr.bf16.mxu0 %v1844
    %2490 = vmatpush1.bf16.msra.mxu0 %v1843
    %2491 = vmatprep.subr.bf16.mxu0 %v1848
    %2492 = vmatpush1.bf16.msra.mxu0 %v1847
    %2493 = vmatprep.mubr.bf16.mxu0 %v732
    %2494 = vmatmul.mubr.bf16.gmra.mrb[0].mxu0 %v731
    %v2495 = vpop.f32.mrb[0].mxu0
    %v2496 = vadd.f32 %v1008, %v2495
    %v2497 = vpop.f32.mrb[0].mxu0
    %v2498 = vadd.f32 %v1012, %v2497
    %v2499 = vpop.f32.mrb[0].mxu0
    %v2500 = vpop.f32.mrb[0].mxu0
    %2501 = vdwg.mxu0
    %2502 = vmatprep.subr.bf16.mxu0 %v1852
    %2503 = vmatpush1.bf16.msra.mxu0 %v1851
    %2504 = vmatprep.subr.bf16.mxu0 %v1856
    %2505 = vmatpush1.bf16.msra.mxu0 %v1855
    %2506 = vmatprep.subr.bf16.mxu0 %v1860
    %2507 = vmatpush1.bf16.msra.mxu0 %v1859
    %2508 = vmatprep.subr.bf16.mxu0 %v1864
    %2509 = vmatpush1.bf16.msra.mxu0 %v1863
    %2510 = vmatprep.subr.bf16.mxu0 %v1868
    %2511 = vmatpush1.bf16.msra.mxu0 %v1867
    %2512 = vmatprep.subr.bf16.mxu0 %v1872
    %2513 = vmatpush1.bf16.msra.mxu0 %v1871
    %2514 = vmatprep.subr.bf16.mxu0 %v1876
    %2515 = vmatpush1.bf16.msra.mxu0 %v1875
    %2516 = vmatprep.subr.bf16.mxu0 %v1880
    %2517 = vmatpush1.bf16.msra.mxu0 %v1879
    %2518 = vmatprep.subr.bf16.mxu0 %v1884
    %2519 = vmatpush1.bf16.msra.mxu0 %v1883
    %2520 = vmatprep.subr.bf16.mxu0 %v1888
    %2521 = vmatpush1.bf16.msra.mxu0 %v1887
    %2522 = vmatprep.subr.bf16.mxu0 %v1892
    %2523 = vmatpush1.bf16.msra.mxu0 %v1891
    %2524 = vmatprep.subr.bf16.mxu0 %v1896
    %2525 = vmatpush1.bf16.msra.mxu0 %v1895
    %2526 = vmatprep.subr.bf16.mxu0 %v1900
    %2527 = vmatpush1.bf16.msra.mxu0 %v1899
    %2528 = vmatprep.subr.bf16.mxu0 %v1904
    %2529 = vmatpush1.bf16.msra.mxu0 %v1903
    %2530 = vmatprep.subr.bf16.mxu0 %v1908
    %2531 = vmatpush1.bf16.msra.mxu0 %v1907
    %2532 = vmatprep.subr.bf16.mxu0 %v1912
    %2533 = vmatpush1.bf16.msra.mxu0 %v1911
    %2534 = vmatprep.mubr.bf16.mxu0 %v734
    %2535 = vmatmul.mubr.bf16.gmra.mrb[0].mxu0 %v733
    %v2536 = vpop.f32.mrb[0].mxu0
    %v2537 = vadd.f32 %v2496, %v2536
    %v2538 = vpop.f32.mrb[0].mxu0
    %v2539 = vadd.f32 %v2498, %v2538
    %v2540 = vpop.f32.mrb[0].mxu0
    %v2541 = vpop.f32.mrb[0].mxu0
    %2542 = vdwg.mxu0
    %2543 = vmatprep.subr.bf16.mxu0 %v1916
    %2544 = vmatpush1.bf16.msra.mxu0 %v1915
    %2545 = vmatprep.subr.bf16.mxu0 %v1920
    %2546 = vmatpush1.bf16.msra.mxu0 %v1919
    %2547 = vmatprep.subr.bf16.mxu0 %v1924
    %2548 = vmatpush1.bf16.msra.mxu0 %v1923
    %2549 = vmatprep.subr.bf16.mxu0 %v1928
    %2550 = vmatpush1.bf16.msra.mxu0 %v1927
    %2551 = vmatprep.subr.bf16.mxu0 %v1932
    %2552 = vmatpush1.bf16.msra.mxu0 %v1931
    %2553 = vmatprep.subr.bf16.mxu0 %v1936
    %2554 = vmatpush1.bf16.msra.mxu0 %v1935
    %2555 = vmatprep.subr.bf16.mxu0 %v1940
    %2556 = vmatpush1.bf16.msra.mxu0 %v1939
    %2557 = vmatprep.subr.bf16.mxu0 %v1944
    %2558 = vmatpush1.bf16.msra.mxu0 %v1943
    %2559 = vmatprep.subr.bf16.mxu0 %v1948
    %2560 = vmatpush1.bf16.msra.mxu0 %v1947
    %2561 = vmatprep.subr.bf16.mxu0 %v1952
    %2562 = vmatpush1.bf16.msra.mxu0 %v1951
    %2563 = vmatprep.subr.bf16.mxu0 %v1956
    %2564 = vmatpush1.bf16.msra.mxu0 %v1955
    %2565 = vmatprep.subr.bf16.mxu0 %v1960
    %2566 = vmatpush1.bf16.msra.mxu0 %v1959
    %2567 = vmatprep.subr.bf16.mxu0 %v1964
    %2568 = vmatpush1.bf16.msra.mxu0 %v1963
    %2569 = vmatprep.subr.bf16.mxu0 %v1968
    %2570 = vmatpush1.bf16.msra.mxu0 %v1967
    %2571 = vmatprep.subr.bf16.mxu0 %v1972
    %2572 = vmatpush1.bf16.msra.mxu0 %v1971
    %2573 = vmatprep.subr.bf16.mxu0 %v1976
    %2574 = vmatpush1.bf16.msra.mxu0 %v1975
    %2575 = vmatprep.mubr.bf16.mxu0 %v736
    %2576 = vmatmul.mubr.bf16.gmra.mrb[0].mxu0 %v735
    %v2577 = vpop.f32.mrb[0].mxu0
    %v2578 = vadd.f32 %v2537, %v2577
    %v2579 = vpop.f32.mrb[0].mxu0
    %v2580 = vadd.f32 %v2539, %v2579
    %v2581 = vpop.f32.mrb[0].mxu0
    %v2582 = vpop.f32.mrb[0].mxu0
    %2583 = vdwg.mxu0
    %2584 = vmatprep.subr.bf16.mxu0 %v1980
    %2585 = vmatpush1.bf16.msra.mxu0 %v1979
    %2586 = vmatprep.subr.bf16.mxu0 %v1984
    %2587 = vmatpush1.bf16.msra.mxu0 %v1983
    %2588 = vmatprep.subr.bf16.mxu0 %v1988
    %2589 = vmatpush1.bf16.msra.mxu0 %v1987
    %2590 = vmatprep.subr.bf16.mxu0 %v1992
    %2591 = vmatpush1.bf16.msra.mxu0 %v1991
    %2592 = vmatprep.subr.bf16.mxu0 %v1996
    %2593 = vmatpush1.bf16.msra.mxu0 %v1995
    %2594 = vmatprep.subr.bf16.mxu0 %v2000
    %2595 = vmatpush1.bf16.msra.mxu0 %v1999
    %2596 = vmatprep.subr.bf16.mxu0 %v2004
    %2597 = vmatpush1.bf16.msra.mxu0 %v2003
    %2598 = vmatprep.subr.bf16.mxu0 %v2008
    %2599 = vmatpush1.bf16.msra.mxu0 %v2007
    %2600 = vmatprep.subr.bf16.mxu0 %v2012
    %2601 = vmatpush1.bf16.msra.mxu0 %v2011
    %2602 = vmatprep.subr.bf16.mxu0 %v2016
    %2603 = vmatpush1.bf16.msra.mxu0 %v2015
    %2604 = vmatprep.subr.bf16.mxu0 %v2020
    %2605 = vmatpush1.bf16.msra.mxu0 %v2019
    %2606 = vmatprep.subr.bf16.mxu0 %v2024
    %2607 = vmatpush1.bf16.msra.mxu0 %v2023
    %2608 = vmatprep.subr.bf16.mxu0 %v2028
    %2609 = vmatpush1.bf16.msra.mxu0 %v2027
    %2610 = vmatprep.subr.bf16.mxu0 %v2032
    %2611 = vmatpush1.bf16.msra.mxu0 %v2031
    %2612 = vmatprep.subr.bf16.mxu0 %v2036
    %2613 = vmatpush1.bf16.msra.mxu0 %v2035
    %2614 = vmatprep.subr.bf16.mxu0 %v2040
    %2615 = vmatpush1.bf16.msra.mxu0 %v2039
    %2616 = vmatprep.mubr.bf16.mxu0 %v738
    %2617 = vmatmul.mubr.bf16.gmra.mrb[0].mxu0 %v737
    %v2618 = vpop.f32.mrb[0].mxu0
    %v2619 = vadd.f32 %v2578, %v2618
    %v2620 = vpop.f32.mrb[0].mxu0
    %v2621 = vadd.f32 %v2580, %v2620
    %v2622 = vpop.f32.mrb[0].mxu0
    %v2623 = vpop.f32.mrb[0].mxu0
    %2624 = vdwg.mxu0
    %v2625 = vmax.f32 %v2455, 0.0
    %v2626 = vmax.f32 %v2457, 0.0
    %v2627 = vmax.f32 %v2619, 0.0
    %v2628 = vmax.f32 %v2621, 0.0
    %v2629 = vpack.c.bf16 %v2625, %v2625
    %v2630 = vpack.c.bf16 %v2626, %v2626
    %v2631 = vpack.c.bf16 %v2627, %v2627
    %v2632 = vpack.c.bf16 %v2628, %v2628
    %v2633 = vld [vmem:[#allocation10] sm:$0xf]
    %v2634 = vld [vmem:[#allocation10 + $0x4] sm:$0xf]
    %v2635 = vld [vmem:[#allocation10 + $0x8] sm:$0xf]
    %v2636 = vld [vmem:[#allocation10 + $0xc] sm:$0xf]
    %v2637 = vld [vmem:[#allocation10 + $0x10] sm:$0xf]
    %v2638 = vld [vmem:[#allocation10 + $0x14] sm:$0xf]
    %v2639 = vld [vmem:[#allocation10 + $0x18] sm:$0xf]
    %v2640 = vld [vmem:[#allocation10 + $0x1c] sm:$0xf]
    %v2641 = vld [vmem:[#allocation10 + $0x20] sm:$0xf]
    %v2642 = vld [vmem:[#allocation10 + $0x24] sm:$0xf]
    %v2643 = vld [vmem:[#allocation10 + $0x28] sm:$0xf]
    %v2644 = vld [vmem:[#allocation10 + $0x2c] sm:$0xf]
    %v2645 = vld [vmem:[#allocation10 + $0x30] sm:$0xf]
    %v2646 = vld [vmem:[#allocation10 + $0x34] sm:$0xf]
    %v2647 = vld [vmem:[#allocation10 + $0x38] sm:$0xf]
    %v2648 = vld [vmem:[#allocation10 + $0x3c] sm:$0xf]
    %v2649 = vld [vmem:[#allocation10 + $0x40] sm:$0xf]
    %v2650 = vld [vmem:[#allocation10 + $0x44] sm:$0xf]
    %v2651 = vld [vmem:[#allocation10 + $0x48] sm:$0xf]
    %v2652 = vld [vmem:[#allocation10 + $0x4c] sm:$0xf]
    %v2653 = vld [vmem:[#allocation10 + $0x50] sm:$0xf]
    %v2654 = vld [vmem:[#allocation10 + $0x54] sm:$0xf]
    %v2655 = vld [vmem:[#allocation10 + $0x58] sm:$0xf]
    %v2656 = vld [vmem:[#allocation10 + $0x5c] sm:$0xf]
    %v2657 = vld [vmem:[#allocation10 + $0x60] sm:$0xf]
    %v2658 = vld [vmem:[#allocation10 + $0x64] sm:$0xf]
    %v2659 = vld [vmem:[#allocation10 + $0x68] sm:$0xf]
    %v2660 = vld [vmem:[#allocation10 + $0x6c] sm:$0xf]
    %v2661 = vld [vmem:[#allocation10 + $0x70] sm:$0xf]
    %v2662 = vld [vmem:[#allocation10 + $0x74] sm:$0xf]
    %v2663 = vld [vmem:[#allocation10 + $0x78] sm:$0xf]
    %v2664 = vld [vmem:[#allocation10 + $0x7c] sm:$0xf]
    %v2665 = vld [vmem:[#allocation10 + $0x80] sm:$0xf]
    %v2666 = vld [vmem:[#allocation10 + $0x84] sm:$0xf]
    %v2667 = vld [vmem:[#allocation10 + $0x88] sm:$0xf]
    %v2668 = vld [vmem:[#allocation10 + $0x8c] sm:$0xf]
    %v2669 = vld [vmem:[#allocation10 + $0x90] sm:$0xf]
    %v2670 = vld [vmem:[#allocation10 + $0x94] sm:$0xf]
    %v2671 = vld [vmem:[#allocation10 + $0x98] sm:$0xf]
    %v2672 = vld [vmem:[#allocation10 + $0x9c] sm:$0xf]
    %v2673 = vld [vmem:[#allocation10 + $0xa0] sm:$0xf]
    %v2674 = vld [vmem:[#allocation10 + $0xa4] sm:$0xf]
    %v2675 = vld [vmem:[#allocation10 + $0xa8] sm:$0xf]
    %v2676 = vld [vmem:[#allocation10 + $0xac] sm:$0xf]
    %v2677 = vld [vmem:[#allocation10 + $0xb0] sm:$0xf]
    %v2678 = vld [vmem:[#allocation10 + $0xb4] sm:$0xf]
    %v2679 = vld [vmem:[#allocation10 + $0xb8] sm:$0xf]
    %v2680 = vld [vmem:[#allocation10 + $0xbc] sm:$0xf]
    %v2681 = vld [vmem:[#allocation10 + $0xc0] sm:$0xf]
    %v2682 = vld [vmem:[#allocation10 + $0xc4] sm:$0xf]
    %v2683 = vld [vmem:[#allocation10 + $0xc8] sm:$0xf]
    %v2684 = vld [vmem:[#allocation10 + $0xcc] sm:$0xf]
    %v2685 = vld [vmem:[#allocation10 + $0xd0] sm:$0xf]
    %v2686 = vld [vmem:[#allocation10 + $0xd4] sm:$0xf]
    %v2687 = vld [vmem:[#allocation10 + $0xd8] sm:$0xf]
    %v2688 = vld [vmem:[#allocation10 + $0xdc] sm:$0xf]
    %v2689 = vld [vmem:[#allocation10 + $0xe0] sm:$0xf]
    %v2690 = vld [vmem:[#allocation10 + $0xe4] sm:$0xf]
    %v2691 = vld [vmem:[#allocation10 + $0xe8] sm:$0xf]
    %v2692 = vld [vmem:[#allocation10 + $0xec] sm:$0xf]
    %v2693 = vld [vmem:[#allocation10 + $0xf0] sm:$0xf]
    %v2694 = vld [vmem:[#allocation10 + $0xf4] sm:$0xf]
    %v2695 = vld [vmem:[#allocation10 + $0xf8] sm:$0xf]
    %v2696 = vld [vmem:[#allocation10 + $0xfc] sm:$0xf]
    %v2697 = vld [vmem:[%s6] sm:$0x1]
    %v2699 = vlaneseq
    %v2700 = vshrl.u32 %v2699, 7
    %v2701 = vsub.s32 0, %v2700
    %v2702 = vrot.slane %v2697, %v2701
    %v2768 = vunpack.c.l.b16 %v2633
    %v2769 = vunpack.c.l.b16 %v2634
    %v2770 = vunpack.c.l.b16 %v2635
    %v2771 = vunpack.c.l.b16 %v2636
    %v2772 = vunpack.c.l.b16 %v2637
    %v2773 = vunpack.c.l.b16 %v2638
    %v2774 = vunpack.c.l.b16 %v2639
    %v2775 = vunpack.c.l.b16 %v2640
    %v2776 = vunpack.c.l.b16 %v2641
    %v2777 = vunpack.c.l.b16 %v2642
    %v2778 = vunpack.c.l.b16 %v2643
    %v2779 = vunpack.c.l.b16 %v2644
    %v2780 = vunpack.c.l.b16 %v2645
    %v2781 = vunpack.c.l.b16 %v2646
    %v2782 = vunpack.c.l.b16 %v2647
    %v2783 = vunpack.c.l.b16 %v2648
    %v2784 = vunpack.c.l.b16 %v2649
    %v2785 = vunpack.c.l.b16 %v2650
    %v2786 = vunpack.c.l.b16 %v2651
    %v2787 = vunpack.c.l.b16 %v2652
    %v2788 = vunpack.c.l.b16 %v2653
    %v2789 = vunpack.c.l.b16 %v2654
    %v2790 = vunpack.c.l.b16 %v2655
    %v2791 = vunpack.c.l.b16 %v2656
    %v2792 = vunpack.c.l.b16 %v2657
    %v2793 = vunpack.c.l.b16 %v2658
    %v2794 = vunpack.c.l.b16 %v2659
    %v2795 = vunpack.c.l.b16 %v2660
    %v2796 = vunpack.c.l.b16 %v2661
    %v2797 = vunpack.c.l.b16 %v2662
    %v2798 = vunpack.c.l.b16 %v2663
    %v2799 = vunpack.c.l.b16 %v2664
    %v2800 = vunpack.c.l.b16 %v2665
    %v2801 = vunpack.c.l.b16 %v2666
    %v2802 = vunpack.c.l.b16 %v2667
    %v2803 = vunpack.c.l.b16 %v2668
    %v2804 = vunpack.c.l.b16 %v2669
    %v2805 = vunpack.c.l.b16 %v2670
    %v2806 = vunpack.c.l.b16 %v2671
    %v2807 = vunpack.c.l.b16 %v2672
    %v2808 = vunpack.c.l.b16 %v2673
    %v2809 = vunpack.c.l.b16 %v2674
    %v2810 = vunpack.c.l.b16 %v2675
    %v2811 = vunpack.c.l.b16 %v2676
    %v2812 = vunpack.c.l.b16 %v2677
    %v2813 = vunpack.c.l.b16 %v2678
    %v2814 = vunpack.c.l.b16 %v2679
    %v2815 = vunpack.c.l.b16 %v2680
    %v2816 = vunpack.c.l.b16 %v2681
    %v2817 = vunpack.c.l.b16 %v2682
    %v2818 = vunpack.c.l.b16 %v2683
    %v2819 = vunpack.c.l.b16 %v2684
    %v2820 = vunpack.c.l.b16 %v2685
    %v2821 = vunpack.c.l.b16 %v2686
    %v2822 = vunpack.c.l.b16 %v2687
    %v2823 = vunpack.c.l.b16 %v2688
    %v2824 = vunpack.c.l.b16 %v2689
    %v2825 = vunpack.c.l.b16 %v2690
    %v2826 = vunpack.c.l.b16 %v2691
    %v2827 = vunpack.c.l.b16 %v2692
    %v2828 = vunpack.c.l.b16 %v2693
    %v2829 = vunpack.c.l.b16 %v2694
    %v2830 = vunpack.c.l.b16 %v2695
    %v2831 = vunpack.c.l.b16 %v2696
    %v2832 = vpack.c.b16 %v2769, %v2768
    %v2833 = vpack.c.b16 %v2771, %v2770
    %v2834 = vpack.c.b16 %v2773, %v2772
    %v2835 = vpack.c.b16 %v2775, %v2774
    %v2836 = vpack.c.b16 %v2777, %v2776
    %v2837 = vpack.c.b16 %v2779, %v2778
    %v2838 = vpack.c.b16 %v2781, %v2780
    %v2839 = vpack.c.b16 %v2783, %v2782
    %v2840 = vpack.c.b16 %v2785, %v2784
    %v2841 = vpack.c.b16 %v2787, %v2786
    %v2842 = vpack.c.b16 %v2789, %v2788
    %v2843 = vpack.c.b16 %v2791, %v2790
    %v2844 = vpack.c.b16 %v2793, %v2792
    %v2845 = vpack.c.b16 %v2795, %v2794
    %v2846 = vpack.c.b16 %v2797, %v2796
    %v2847 = vpack.c.b16 %v2799, %v2798
    %v2848 = vpack.c.b16 %v2801, %v2800
    %v2849 = vpack.c.b16 %v2803, %v2802
    %v2850 = vpack.c.b16 %v2805, %v2804
    %v2851 = vpack.c.b16 %v2807, %v2806
    %v2852 = vpack.c.b16 %v2809, %v2808
    %v2853 = vpack.c.b16 %v2811, %v2810
    %v2854 = vpack.c.b16 %v2813, %v2812
    %v2855 = vpack.c.b16 %v2815, %v2814
    %v2856 = vpack.c.b16 %v2817, %v2816
    %v2857 = vpack.c.b16 %v2819, %v2818
    %v2858 = vpack.c.b16 %v2821, %v2820
    %v2859 = vpack.c.b16 %v2823, %v2822
    %v2860 = vpack.c.b16 %v2825, %v2824
    %v2861 = vpack.c.b16 %v2827, %v2826
    %v2862 = vpack.c.b16 %v2829, %v2828
    %v2863 = vpack.c.b16 %v2831, %v2830
    %2896 = vmatprep.subr.bf16.mxu0 0
    %2897 = vmatpush1.bf16.msra.mxu0 %v2832
    %2898 = vmatprep.subr.bf16.mxu0 0
    %2899 = vmatpush1.bf16.msra.mxu0 %v2833
    %2900 = vmatprep.subr.bf16.mxu0 0
    %2901 = vmatpush1.bf16.msra.mxu0 %v2834
    %2902 = vmatprep.subr.bf16.mxu0 0
    %2903 = vmatpush1.bf16.msra.mxu0 %v2835
    %2904 = vmatprep.subr.bf16.mxu0 0
    %2905 = vmatpush1.bf16.msra.mxu0 %v2836
    %2906 = vmatprep.subr.bf16.mxu0 0
    %2907 = vmatpush1.bf16.msra.mxu0 %v2837
    %2908 = vmatprep.subr.bf16.mxu0 0
    %2909 = vmatpush1.bf16.msra.mxu0 %v2838
    %2910 = vmatprep.subr.bf16.mxu0 0
    %2911 = vmatpush1.bf16.msra.mxu0 %v2839
    %2912 = vmatprep.subr.bf16.mxu0 0
    %2913 = vmatpush1.bf16.msra.mxu0 %v2840
    %2914 = vmatprep.subr.bf16.mxu0 0
    %2915 = vmatpush1.bf16.msra.mxu0 %v2841
    %2916 = vmatprep.subr.bf16.mxu0 0
    %2917 = vmatpush1.bf16.msra.mxu0 %v2842
    %2918 = vmatprep.subr.bf16.mxu0 0
    %2919 = vmatpush1.bf16.msra.mxu0 %v2843
    %2920 = vmatprep.subr.bf16.mxu0 0
    %2921 = vmatpush1.bf16.msra.mxu0 %v2844
    %2922 = vmatprep.subr.bf16.mxu0 0
    %2923 = vmatpush1.bf16.msra.mxu0 %v2845
    %2924 = vmatprep.subr.bf16.mxu0 0
    %2925 = vmatpush1.bf16.msra.mxu0 %v2846
    %2926 = vmatprep.subr.bf16.mxu0 0
    %2927 = vmatpush1.bf16.msra.mxu0 %v2847
    %2928 = vmatprep.mubr.bf16.mxu0 %v2630
    %2929 = vmatmul.mubr.bf16.gmra.mrb[0].mxu0 %v2629
    %v2930 = vpop.f32.mrb[0].mxu0
    %v2931 = vadd.f32 %v2702, %v2930
    %v2932 = vpop.f32.mrb[0].mxu0
    %v2933 = vpop.f32.mrb[0].mxu0
    %v2934 = vpop.f32.mrb[0].mxu0
    %2935 = vdwg.mxu0
    %2936 = vmatprep.subr.bf16.mxu0 0
    %2937 = vmatpush1.bf16.msra.mxu0 %v2848
    %2938 = vmatprep.subr.bf16.mxu0 0
    %2939 = vmatpush1.bf16.msra.mxu0 %v2849
    %2940 = vmatprep.subr.bf16.mxu0 0
    %2941 = vmatpush1.bf16.msra.mxu0 %v2850
    %2942 = vmatprep.subr.bf16.mxu0 0
    %2943 = vmatpush1.bf16.msra.mxu0 %v2851
    %2944 = vmatprep.subr.bf16.mxu0 0
    %2945 = vmatpush1.bf16.msra.mxu0 %v2852
    %2946 = vmatprep.subr.bf16.mxu0 0
    %2947 = vmatpush1.bf16.msra.mxu0 %v2853
    %2948 = vmatprep.subr.bf16.mxu0 0
    %2949 = vmatpush1.bf16.msra.mxu0 %v2854
    %2950 = vmatprep.subr.bf16.mxu0 0
    %2951 = vmatpush1.bf16.msra.mxu0 %v2855
    %2952 = vmatprep.subr.bf16.mxu0 0
    %2953 = vmatpush1.bf16.msra.mxu0 %v2856
    %2954 = vmatprep.subr.bf16.mxu0 0
    %2955 = vmatpush1.bf16.msra.mxu0 %v2857
    %2956 = vmatprep.subr.bf16.mxu0 0
    %2957 = vmatpush1.bf16.msra.mxu0 %v2858
    %2958 = vmatprep.subr.bf16.mxu0 0
    %2959 = vmatpush1.bf16.msra.mxu0 %v2859
    %2960 = vmatprep.subr.bf16.mxu0 0
    %2961 = vmatpush1.bf16.msra.mxu0 %v2860
    %2962 = vmatprep.subr.bf16.mxu0 0
    %2963 = vmatpush1.bf16.msra.mxu0 %v2861
    %2964 = vmatprep.subr.bf16.mxu0 0
    %2965 = vmatpush1.bf16.msra.mxu0 %v2862
    %2966 = vmatprep.subr.bf16.mxu0 0
    %2967 = vmatpush1.bf16.msra.mxu0 %v2863
    %2968 = vmatprep.mubr.bf16.mxu0 %v2632
    %2969 = vmatmul.mubr.bf16.gmra.mrb[0].mxu0 %v2631
    %v2970 = vpop.f32.mrb[0].mxu0
    %v2971 = vadd.f32 %v2931, %v2970
    %v2972 = vpop.f32.mrb[0].mxu0
    %v2973 = vpop.f32.mrb[0].mxu0
    %v2974 = vpop.f32.mrb[0].mxu0
    %2975 = vdwg.mxu0
    %v2976 = vmax.f32 %v2971, 0.0
    %v2977 = vpack.c.bf16 %v2976, %v2976
    %v2978 = vld [vmem:[#allocation11] sm:$0xf]
    %v2979 = vld [vmem:[#allocation11 + $0x4] sm:$0xf]
    %v2980 = vld [vmem:[#allocation11 + $0x8] sm:$0xf]
    %v2981 = vld [vmem:[#allocation11 + $0xc] sm:$0xf]
    %v2982 = vld [vmem:[#allocation11 + $0x10] sm:$0xf]
    %v2983 = vld [vmem:[#allocation11 + $0x14] sm:$0xf]
    %v2984 = vld [vmem:[#allocation11 + $0x18] sm:$0xf]
    %v2985 = vld [vmem:[#allocation11 + $0x1c] sm:$0xf]
    %v2986 = vld [vmem:[#allocation11 + $0x20] sm:$0xf]
    %v2987 = vld [vmem:[#allocation11 + $0x24] sm:$0xf]
    %v2988 = vld [vmem:[#allocation11 + $0x28] sm:$0xf]
    %v2989 = vld [vmem:[#allocation11 + $0x2c] sm:$0xf]
    %v2990 = vld [vmem:[#allocation11 + $0x30] sm:$0xf]
    %v2991 = vld [vmem:[#allocation11 + $0x34] sm:$0xf]
    %v2992 = vld [vmem:[#allocation11 + $0x38] sm:$0xf]
    %v2993 = vld [vmem:[#allocation11 + $0x3c] sm:$0xf]
    %v2994 = vld [vmem:[%s8] sm:$0x1]
    %v2996 = vlaneseq
    %v2997 = vshrl.u32 %v2996, 7
    %v2998 = vsub.s32 0, %v2997
    %v2999 = vrot.slane %v2994, %v2998
    %v3017 = vunpack.c.l.b16 %v2978
    %v3018 = vunpack.c.l.b16 %v2979
    %v3019 = vunpack.c.l.b16 %v2980
    %v3020 = vunpack.c.l.b16 %v2981
    %v3021 = vunpack.c.l.b16 %v2982
    %v3022 = vunpack.c.l.b16 %v2983
    %v3023 = vunpack.c.l.b16 %v2984
    %v3024 = vunpack.c.l.b16 %v2985
    %v3025 = vunpack.c.l.b16 %v2986
    %v3026 = vunpack.c.l.b16 %v2987
    %v3027 = vunpack.c.l.b16 %v2988
    %v3028 = vunpack.c.l.b16 %v2989
    %v3029 = vunpack.c.l.b16 %v2990
    %v3030 = vunpack.c.l.b16 %v2991
    %v3031 = vunpack.c.l.b16 %v2992
    %v3032 = vunpack.c.l.b16 %v2993
    %v3033 = vpack.c.b16 %v3018, %v3017
    %v3034 = vpack.c.b16 %v3020, %v3019
    %v3035 = vpack.c.b16 %v3022, %v3021
    %v3036 = vpack.c.b16 %v3024, %v3023
    %v3037 = vpack.c.b16 %v3026, %v3025
    %v3038 = vpack.c.b16 %v3028, %v3027
    %v3039 = vpack.c.b16 %v3030, %v3029
    %v3040 = vpack.c.b16 %v3032, %v3031
    %3049 = vmatprep.subr.bf16.mxu0 0
    %3050 = vmatpush1.bf16.msra.mxu0 %v3033
    %3051 = vmatprep.subr.bf16.mxu0 0
    %3052 = vmatpush1.bf16.msra.mxu0 %v3034
    %3053 = vmatprep.subr.bf16.mxu0 0
    %3054 = vmatpush1.bf16.msra.mxu0 %v3035
    %3055 = vmatprep.subr.bf16.mxu0 0
    %3056 = vmatpush1.bf16.msra.mxu0 %v3036
    %3057 = vmatprep.subr.bf16.mxu0 0
    %3058 = vmatpush1.bf16.msra.mxu0 %v3037
    %3059 = vmatprep.subr.bf16.mxu0 0
    %3060 = vmatpush1.bf16.msra.mxu0 %v3038
    %3061 = vmatprep.subr.bf16.mxu0 0
    %3062 = vmatpush1.bf16.msra.mxu0 %v3039
    %3063 = vmatprep.subr.bf16.mxu0 0
    %3064 = vmatpush1.bf16.msra.mxu0 %v3040
    %3065 = vmatprep.subr.bf16.mxu0 0
    %3066 = vmatpush1.bf16.msra.mxu0 0
    %3067 = vmatprep.subr.bf16.mxu0 0
    %3068 = vmatpush1.bf16.msra.mxu0 0
    %3069 = vmatprep.subr.bf16.mxu0 0
    %3070 = vmatpush1.bf16.msra.mxu0 0
    %3071 = vmatprep.subr.bf16.mxu0 0
    %3072 = vmatpush1.bf16.msra.mxu0 0
    %3073 = vmatprep.subr.bf16.mxu0 0
    %3074 = vmatpush1.bf16.msra.mxu0 0
    %3075 = vmatprep.subr.bf16.mxu0 0
    %3076 = vmatpush1.bf16.msra.mxu0 0
    %3077 = vmatprep.subr.bf16.mxu0 0
    %3078 = vmatpush1.bf16.msra.mxu0 0
    %3079 = vmatprep.subr.bf16.mxu0 0
    %3080 = vmatpush1.bf16.msra.mxu0 0
    %3081 = vmatprep.mubr.bf16.mxu0 0
    %3082 = vmatmul.mubr.bf16.gmra.mrb[0].mxu0 %v2977
    %v3083 = vpop.f32.mrb[0].mxu0
    %v3084 = vadd.f32 %v2999, %v3083
    %v3085 = vpop.f32.mrb[0].mxu0
    %v3086 = vpop.f32.mrb[0].mxu0
    %v3087 = vpop.f32.mrb[0].mxu0
    %3088 = vdwg.mxu0
    %v3089 = vmax.f32 %v3084, 0.0
    %v3090 = vpack.c.bf16 %v3089, %v3089
    %v3091 = vld [vmem:[#allocation13] sm:$0xf]
    %v3092 = vld [vmem:[#allocation13 + $0x4] sm:$0xf]
    %v3093 = vld [vmem:[#allocation13 + $0x8] sm:$0xf]
    %v3094 = vld [vmem:[#allocation13 + $0xc] sm:$0xf]
    %v3095 = vld [vmem:[#allocation13 + $0x10] sm:$0xf]
    %v3096 = vld [vmem:[#allocation13 + $0x14] sm:$0xf]
    %v3097 = vld [vmem:[#allocation13 + $0x18] sm:$0xf]
    %v3098 = vld [vmem:[#allocation13 + $0x1c] sm:$0xf]
    %v3099 = vld [vmem:[#allocation13 + $0x20] sm:$0xf]
    %v3100 = vld [vmem:[#allocation13 + $0x24] sm:$0xf]
    %v3101 = vld [vmem:[#allocation13 + $0x28] sm:$0xf]
    %v3102 = vld [vmem:[#allocation13 + $0x2c] sm:$0xf]
    %v3103 = vld [vmem:[#allocation13 + $0x30] sm:$0xf]
    %v3104 = vld [vmem:[#allocation13 + $0x34] sm:$0xf]
    %v3105 = vld [vmem:[#allocation13 + $0x38] sm:$0xf]
    %v3106 = vld [vmem:[#allocation13 + $0x3c] sm:$0xf]
    %v3107 = vld [vmem:[%s10] sm:$0x1]
    %v3109 = vlaneseq
    %v3110 = vshrl.u32 %v3109, 7
    %v3111 = vsub.s32 0, %v3110
    %v3112 = vrot.slane %v3107, %v3111
    %v3130 = vunpack.c.l.b16 %v3091
    %v3131 = vunpack.c.l.b16 %v3092
    %v3132 = vunpack.c.l.b16 %v3093
    %v3133 = vunpack.c.l.b16 %v3094
    %v3134 = vunpack.c.l.b16 %v3095
    %v3135 = vunpack.c.l.b16 %v3096
    %v3136 = vunpack.c.l.b16 %v3097
    %v3137 = vunpack.c.l.b16 %v3098
    %v3138 = vunpack.c.l.b16 %v3099
    %v3139 = vunpack.c.l.b16 %v3100
    %v3140 = vunpack.c.l.b16 %v3101
    %v3141 = vunpack.c.l.b16 %v3102
    %v3142 = vunpack.c.l.b16 %v3103
    %v3143 = vunpack.c.l.b16 %v3104
    %v3144 = vunpack.c.l.b16 %v3105
    %v3145 = vunpack.c.l.b16 %v3106
    %v3146 = vpack.c.b16 %v3131, %v3130
    %v3147 = vpack.c.b16 %v3133, %v3132
    %v3148 = vpack.c.b16 %v3135, %v3134
    %v3149 = vpack.c.b16 %v3137, %v3136
    %v3150 = vpack.c.b16 %v3139, %v3138
    %v3151 = vpack.c.b16 %v3141, %v3140
    %v3152 = vpack.c.b16 %v3143, %v3142
    %v3153 = vpack.c.b16 %v3145, %v3144
    %3162 = vmatprep.subr.bf16.mxu0 0
    %3163 = vmatpush1.bf16.msra.mxu0 %v3146
    %3164 = vmatprep.subr.bf16.mxu0 0
    %3165 = vmatpush1.bf16.msra.mxu0 %v3147
    %3166 = vmatprep.subr.bf16.mxu0 0
    %3167 = vmatpush1.bf16.msra.mxu0 %v3148
    %3168 = vmatprep.subr.bf16.mxu0 0
    %3169 = vmatpush1.bf16.msra.mxu0 %v3149
    %3170 = vmatprep.subr.bf16.mxu0 0
    %3171 = vmatpush1.bf16.msra.mxu0 %v3150
    %3172 = vmatprep.subr.bf16.mxu0 0
    %3173 = vmatpush1.bf16.msra.mxu0 %v3151
    %3174 = vmatprep.subr.bf16.mxu0 0
    %3175 = vmatpush1.bf16.msra.mxu0 %v3152
    %3176 = vmatprep.subr.bf16.mxu0 0
    %3177 = vmatpush1.bf16.msra.mxu0 %v3153
    %3178 = vmatprep.subr.bf16.mxu0 0
    %3179 = vmatpush1.bf16.msra.mxu0 0
    %3180 = vmatprep.subr.bf16.mxu0 0
    %3181 = vmatpush1.bf16.msra.mxu0 0
    %3182 = vmatprep.subr.bf16.mxu0 0
    %3183 = vmatpush1.bf16.msra.mxu0 0
    %3184 = vmatprep.subr.bf16.mxu0 0
    %3185 = vmatpush1.bf16.msra.mxu0 0
    %3186 = vmatprep.subr.bf16.mxu0 0
    %3187 = vmatpush1.bf16.msra.mxu0 0
    %3188 = vmatprep.subr.bf16.mxu0 0
    %3189 = vmatpush1.bf16.msra.mxu0 0
    %3190 = vmatprep.subr.bf16.mxu0 0
    %3191 = vmatpush1.bf16.msra.mxu0 0
    %3192 = vmatprep.subr.bf16.mxu0 0
    %3193 = vmatpush1.bf16.msra.mxu0 0
    %3194 = vmatprep.mubr.bf16.mxu0 0
    %3195 = vmatmul.mubr.bf16.gmra.mrb[0].mxu0 %v3090
    %v3196 = vpop.f32.mrb[0].mxu0
    %v3197 = vadd.f32 %v3112, %v3196
    %v3198 = vpop.f32.mrb[0].mxu0
    %v3199 = vpop.f32.mrb[0].mxu0
    %v3200 = vpop.f32.mrb[0].mxu0
    %3201 = vdwg.mxu0
    %3202 = vst [vmem:[#allocation14] sm:$0xff] %v3197
    // Predicated region
    $region74: #{tpu_custom_call.1} parent=1 // pred_check
      _
    $region75: #{tpu_custom_call.1} parent=1 // pred_check_branch
      %3204 = sbr.rel (0) target = $region77
    $region76: #{tpu_custom_call.1} parent=1 // pred_region
      %s3206 = ssub.s32 128, 128
      %3207 = vsyncadd [#allocation4], %s3206
      %s3209 = sshll.u32 [#allocation14], 4
      %s3210 = int_to_ptr.vmem [resolvable:$true] %s3209
      %3212 = dma.vmem_to_hbm [thread:$0]  %s3210, 128, %s11, [#allocation4]
    $region77: #{tpu_custom_call.1} parent=1 // pred_fallthru
      _
    // Predicated region
    $region78: #{tpu_custom_call.1} parent=1 // pred_check
      _
    $region79: #{tpu_custom_call.1} parent=1 // pred_check_branch
      %3214 = sbr.rel (0) target = $region81
    $region80: #{tpu_custom_call.1} parent=1 // pred_region
      %3215 = dma.done [#allocation4], 128
    $region81: #{tpu_custom_call.1} parent=1 // pred_fallthru
      _
    %3216 = vsyncpa [#allocation3], 1
    %3217 = vsyncpa [#allocation6], 1
    %3218 = vsyncpa [#allocation9], 1
    %3219 = vsyncpa [#allocation12], 1
    %3220 = vsyncpa [#allocation4], 1

</llo_original>
